<compile_context>
chip_gen: v5e
topology: v5e:2x2
jax: 0.10.0
libtpu: 0.0.40
codegen_flags: <defaults>
</compile_context>

<pallas_src>
import jax
import jax.numpy as jnp
import numpy as np
from jax.experimental import pallas as pl
from jax.experimental.pallas import tpu as pltpu


def pair_to_sequence_kernel(
    s_z_ref,      # (1, TL, L, c_z)   pair block (this tile's rows i), any float dtype
    mask_ref,     # (1, TL, L)
    s_in_ref,     # (1, L, c_s)       f32
    w1_ref,       # (c_z, c_z)        bf16, gamma folded in
    b1_ref,       # (1, c_z)          f32, beta@w1 folded in
    wcc_ref,      # (c_z, c_out_p)    f32, w2 @ wc[:c_z]
    wcr_ref,      # (c_z, c_out_p)    f32, w2 @ wc[c_z:2c_z]
    wcs_ref,      # (c_s, c_out_p)    f32, wc[2c_z:]
    b2c_ref,      # (1, c_out_p)      b2 @ wc[:c_z]
    b2r_ref,      # (1, c_out_p)      b2 @ wc[c_z:2c_z]
    bc_ref,       # (1, c_out_p)
    out_ref,      # (1, L, c_out_p)
    c_acc,        # (L, c_z) scratch: per-row masked mean of h   (c branch)
    gate_c_acc,   # (L, 1)   scratch: row gate = msum_c / max(msum_c, 1)
    r_acc,        # (L, c_z) scratch: column-sum accumulator     (r branch)
    msum_r_acc,   # (L, 1)   scratch: column mask-count accumulator
):
    t = pl.program_id(1)
    n_t = pl.num_programs(1)
    tl = s_z_ref.shape[1]
    L = s_z_ref.shape[2]
    cz = s_z_ref.shape[3]

    @pl.when(t == 0)
    def _init():
        r_acc[...] = jnp.zeros_like(r_acc)
        msum_r_acc[...] = jnp.zeros_like(msum_r_acc)

    # ---- LayerNorm (stats in f32, single-pass variance) -> bf16 Linear -> ReLU
    z = s_z_ref[...].reshape(tl * L, cz).astype(jnp.float32)
    mu = jnp.mean(z, axis=-1, keepdims=True)
    var = jnp.maximum(jnp.mean(z * z, axis=-1, keepdims=True) - mu * mu, 0.0)
    zn = ((z - mu) * jax.lax.rsqrt(var + 1e-5)).astype(jnp.bfloat16)

    h = jnp.dot(zn, w1_ref[...], preferred_element_type=jnp.float32) + b1_ref[...]
    h = jnp.maximum(h, 0.0)                                     # (tl*L, cz) f32

    # ---- masked reductions on h (w2/b2 are folded into the combiner) ----
    mask = mask_ref[...].reshape(tl, L).astype(jnp.float32)     # (tl, L)
    mask3 = mask[..., None]                                     # (tl, L, 1)
    hm = h.reshape(tl, L, cz) * mask3                           # (tl, L, cz)

    # c branch (torch dim=2): rows of this tile are fully resolved here.
    msum_c = jnp.sum(mask, axis=1, keepdims=True)               # (tl, 1)
    norm_c = jnp.maximum(msum_c, 1.0)
    i0 = pl.multiple_of(t * tl, tl)
    c_acc[pl.ds(i0, tl), :] = jnp.sum(hm, axis=1) / norm_c
    gate_c_acc[pl.ds(i0, tl), :] = msum_c / norm_c

    # r branch (torch dim=1): accumulate column sums across row tiles.
    r_acc[...] += jnp.sum(hm, axis=0)                           # (L, cz)
    msum_r_acc[...] += jnp.sum(mask3, axis=0)                   # (L, 1)

    # ---- finalize: three accumulated combiner matmuls (no concat) ----
    @pl.when(t == n_t - 1)
    def _finalize():
        norm_r = jnp.maximum(msum_r_acc[...], 1.0)              # (L, 1)
        gate_r = msum_r_acc[...] / norm_r                       # (L, 1)
        hbar_r = r_acc[...] / norm_r                            # (L, cz)
        s_in = s_in_ref[0].astype(jnp.float32)                  # (L, c_s)
        out = jnp.dot(c_acc[...], wcc_ref[...], preferred_element_type=jnp.float32)
        out += jnp.dot(hbar_r, wcr_ref[...], preferred_element_type=jnp.float32)
        out += jnp.dot(s_in, wcs_ref[...], preferred_element_type=jnp.float32)
        out += (gate_c_acc[...] * b2c_ref[...]
                + gate_r * b2r_ref[...]
                + bc_ref[...])
        out_ref[0] = out.astype(out_ref.dtype)


def _vmem_capacity_bytes():
    try:
        info = pltpu.get_tpu_info()
        for attr in ("vmem_capacity_bytes", "vmem_size_bytes", "vmem_bytes"):
            v = getattr(info, attr, None)
            if v:
                return int(v)
    except Exception:
        pass
    return 128 << 20


def _pick_row_tile(L, c_z, itemsize, working_set_budget):
    """Largest multiple-of-8 row tile dividing L whose per-step working set
    (double-buffered input block + z/h/hm f32 temps + bf16 zn) fits the budget."""
    def ws(tl):
        elems = tl * L * c_z
        return elems * (2 * itemsize + 3 * 4 + 2)
    if L % 8 != 0:
        return L
    cands = [tl for tl in range(8, L + 1, 8)
             if L % tl == 0 and ws(tl) <= working_set_budget]
    return max(cands) if cands else 8


def pair_to_sequence(s_z, s_s_in, pair_mask, params, *, row_tile=None):
    B, L, L2, c_z = s_z.shape
    assert L == L2
    c_s = s_s_in.shape[-1]
    c_s_out = params["bc"].shape[-1]
    c_out_p = ((c_s_out + 127) // 128) * 128      # lane-dense padded output width

    # Generation-aware tiling / VMEM limit.
    vmem_cap = _vmem_capacity_bytes()
    if vmem_cap <= (64 << 20):                    # v7x-class: 64 MiB VMEM per TC
        ws_budget, vmem_limit = (20 << 20), (48 << 20)
    else:                                         # v5e / v6e: 128 MiB VMEM
        ws_budget, vmem_limit = (64 << 20), (100 << 20)

    itemsize = jnp.dtype(s_z.dtype).itemsize
    if row_tile is None:
        row_tile = _pick_row_tile(L, c_z, itemsize, ws_budget)
    assert L % row_tile == 0
    assert row_tile == L or row_tile % 8 == 0
    n_tiles = L // row_tile

    # NOTE: s_z / pair_mask are consumed in the caller's dtype (bf16 recommended
    # for the HBM-bound pair tensor); the kernel upcasts in-register.
    s_s_in = s_s_in.astype(jnp.float32)

    def f32(x):
        return jnp.asarray(x, jnp.float32)

    gamma = f32(params["gamma"])
    beta = f32(params["beta"])
    w1 = f32(params["w1"])
    b1 = f32(params["b1"])
    w2 = f32(params["w2"])
    b2 = f32(params["b2"])
    wc = f32(params["wc"])                         # (2*c_z + c_s, c_s_out)
    bc = f32(params["bc"]).reshape(1, c_s_out)

    # Fold LayerNorm affine into the first Linear:
    #   (zn*gamma + beta) @ w1 + b1 == zn @ (gamma[:,None]*w1) + (b1 + beta@w1)
    w1f = (gamma[:, None] * w1).astype(jnp.bfloat16)
    b1f = (b1 + beta @ w1).reshape(1, c_z)

    # Fold w2 / b2 past the masked reductions:
    #   s_s_c @ wc_c + s_s_r @ wc_r + s_in @ wc_s + bc
    # == hbar_c@(w2@wc_c) + hbar_r@(w2@wc_r) + s_in@wc_s
    #    + g_c*(b2@wc_c) + g_r*(b2@wc_r) + bc
    wc_c, wc_r, wc_s = wc[:c_z], wc[c_z:2 * c_z], wc[2 * c_z:]
    wcc = w2 @ wc_c
    wcr = w2 @ wc_r
    wcs = wc_s
    b2c = (b2 @ wc_c).reshape(1, c_s_out)
    b2r = (b2 @ wc_r).reshape(1, c_s_out)

    pad = c_out_p - c_s_out
    if pad:
        wcc = jnp.pad(wcc, ((0, 0), (0, pad)))
        wcr = jnp.pad(wcr, ((0, 0), (0, pad)))
        wcs = jnp.pad(wcs, ((0, 0), (0, pad)))
        b2c = jnp.pad(b2c, ((0, 0), (0, pad)))
        b2r = jnp.pad(b2r, ((0, 0), (0, pad)))
        bc = jnp.pad(bc, ((0, 0), (0, pad)))

    def fixed(shape):
        n = len(shape)
        return pl.BlockSpec(shape, lambda b, t, _n=n: (0,) * _n)

    grid_spec = pltpu.PrefetchScalarGridSpec(
        num_scalar_prefetch=0,
        grid=(B, n_tiles),
        in_specs=[
            pl.BlockSpec((1, row_tile, L, c_z), lambda b, t: (b, t, 0, 0)),
            pl.BlockSpec((1, row_tile, L), lambda b, t: (b, t, 0)),
            pl.BlockSpec((1, L, c_s), lambda b, t: (b, 0, 0)),
            fixed((c_z, c_z)),                 # w1f (bf16, gamma folded)
            fixed((1, c_z)),                   # b1f
            fixed((c_z, c_out_p)),             # wcc
            fixed((c_z, c_out_p)),             # wcr
            fixed((c_s, c_out_p)),             # wcs
            fixed((1, c_out_p)),               # b2c
            fixed((1, c_out_p)),               # b2r
            fixed((1, c_out_p)),               # bc
        ],
        out_specs=pl.BlockSpec((1, L, c_out_p), lambda b, t: (b, 0, 0)),
        scratch_shapes=[
            pltpu.VMEM((L, c_z), jnp.float32),   # c_acc
            pltpu.VMEM((L, 1), jnp.float32),     # gate_c_acc
            pltpu.VMEM((L, c_z), jnp.float32),   # r_acc
            pltpu.VMEM((L, 1), jnp.float32),     # msum_r_acc
        ],
    )

    out = pl.pallas_call(
        pair_to_sequence_kernel,
        out_shape=jax.ShapeDtypeStruct((B, L, c_out_p), jnp.float32),
        grid_spec=grid_spec,
        compiler_params=pltpu.CompilerParams(
            dimension_semantics=("parallel", "arbitrary"),
            vmem_limit_bytes=vmem_limit,
        ),
    )(
        s_z, pair_mask, s_s_in,
        w1f, b1f, wcc, wcr, wcs, b2c, b2r, bc,
    )
    return out[..., :c_s_out]


def pair_to_sequence_ref(s_z, s_s_in, pair_mask, params):
    """Pure-JAX reference mirroring the PyTorch module (all f32)."""
    mu = jnp.mean(s_z, axis=-1, keepdims=True)
    var = jnp.mean((s_z - mu) ** 2, axis=-1, keepdims=True)
    zn = (s_z - mu) * jax.lax.rsqrt(var + 1e-5) * params["gamma"] + params["beta"]
    h = jnp.maximum(zn @ params["w1"] + params["b1"], 0.0)
    z2 = h @ params["w2"] + params["b2"]
    z2 = z2 * pair_mask[..., None]
    norm_c = jnp.maximum(pair_mask.sum(axis=2), 1.0)
    s_s_c = z2.sum(axis=2) / norm_c[..., None]
    norm_r = jnp.maximum(pair_mask.sum(axis=1), 1.0)
    s_s_r = z2.sum(axis=1) / norm_r[..., None]
    feat = jnp.concatenate([s_s_c, s_s_r, s_s_in], axis=-1)
    return feat @ params["wc"] + params["bc"]


def init_params(key, c_z, c_s, c_s_out):
    ks = jax.random.split(key, 6)
    scale1 = 1.0 / np.sqrt(c_z)
    scale_c = 1.0 / np.sqrt(2 * c_z + c_s)
    return {
        "gamma": jnp.ones((c_z,), jnp.float32),
        "beta": jnp.zeros((c_z,), jnp.float32),
        "w1": jax.random.uniform(ks[0], (c_z, c_z), jnp.float32, -scale1, scale1),
        "b1": jax.random.uniform(ks[1], (c_z,), jnp.float32, -scale1, scale1),
        "w2": jax.random.uniform(ks[2], (c_z, c_z), jnp.float32, -scale1, scale1),
        "b2": jax.random.uniform(ks[3], (c_z,), jnp.float32, -scale1, scale1),
        "wc": jax.random.uniform(
            ks[4], (2 * c_z + c_s, c_s_out), jnp.float32, -scale_c, scale_c
        ),
        "bc": jax.random.uniform(ks[5], (c_s_out,), jnp.float32, -scale_c, scale_c),
    }


if __name__ == "__main__":
    B, L, c_z, c_s, c_s_out = 2, 16, 32, 64, 64

    key = jax.random.PRNGKey(0)
    k_z, k_s, k_m, k_p = jax.random.split(key, 4)

    # bf16-representable pair activations so the f32 reference sees the exact
    # same values the (bf16-fed) kernel does.
    s_z_f32 = jax.random.normal(k_z, (B, L, L, c_z), jnp.float32)
    s_z_f32 = s_z_f32.astype(jnp.bfloat16).astype(jnp.float32)
    s_z_bf16 = s_z_f32.astype(jnp.bfloat16)          # caller-supplied bf16 contract

    s_s_in = jax.random.normal(k_s, (B, L, c_s), jnp.float32)
    pair_mask = (jax.random.uniform(k_m, (B, L, L)) > 0.3).astype(jnp.float32)
    # Fully-masked row/column to exercise the clamp / b2-gate path.
    pair_mask = pair_mask.at[:, 3, :].set(0.0)
    pair_mask = pair_mask.at[:, :, 5].set(0.0)

    params = init_params(k_p, c_z, c_s, c_s_out)

    # row_tile=8 -> 2 row tiles per batch, exercising the accumulator path.
    out = pair_to_sequence(s_z_bf16, s_s_in, pair_mask, params, row_tile=8)
    out = jax.block_until_ready(out)

    ref = pair_to_sequence_ref(s_z_f32, s_s_in, pair_mask, params)
    np.testing.assert_allclose(np.asarray(out), np.asarray(ref), rtol=2e-2, atol=2e-2)

    print("KERNEL_OK")
</pallas_src>

<mosaic_0001>
module attributes {stable_mosaic.version = 11 : i64} {
  func.func @pair_to_sequence_kernel(%arg0: i32, %arg1: i32, %arg2: memref<1x8x16x32xbf16, #tpu.memory_space<vmem>>, %arg3: memref<1x8x16xf32, #tpu.memory_space<vmem>>, %arg4: memref<1x16x64xf32, #tpu.memory_space<vmem>>, %arg5: memref<32x32xbf16, #tpu.memory_space<vmem>>, %arg6: memref<1x32xf32, #tpu.memory_space<vmem>>, %arg7: memref<32x128xf32, #tpu.memory_space<vmem>>, %arg8: memref<32x128xf32, #tpu.memory_space<vmem>>, %arg9: memref<64x128xf32, #tpu.memory_space<vmem>>, %arg10: memref<1x128xf32, #tpu.memory_space<vmem>>, %arg11: memref<1x128xf32, #tpu.memory_space<vmem>>, %arg12: memref<1x128xf32, #tpu.memory_space<vmem>>, %arg13: memref<1x16x128xf32, #tpu.memory_space<vmem>>, %arg14: memref<16x32xf32, #tpu.memory_space<vmem>>, %arg15: memref<16x1xf32, #tpu.memory_space<vmem>>, %arg16: memref<16x32xf32, #tpu.memory_space<vmem>>, %arg17: memref<16x1xf32, #tpu.memory_space<vmem>>) attributes {dimension_semantics = [#tpu.dimension_semantics<parallel>, #tpu.dimension_semantics<arbitrary>], iteration_bounds = array<i64: 2, 2>, scalar_prefetch = 0 : i64, scratch_operands = 4 : i64, tpu.core_type = #tpu.core_type<tc>, window_params = [{transform_indices = @transform_0, window_bounds = array<i64: 1, 8, 16, 32>}, {transform_indices = @transform_1, window_bounds = array<i64: 1, 8, 16>}, {transform_indices = @transform_2, window_bounds = array<i64: 1, 16, 64>}, {pipeline_mode = #tpu.pipeline_mode<synchronous>, transform_indices = @transform_3, window_bounds = array<i64: 32, 32>}, {pipeline_mode = #tpu.pipeline_mode<synchronous>, transform_indices = @transform_4, window_bounds = array<i64: 1, 32>}, {pipeline_mode = #tpu.pipeline_mode<synchronous>, transform_indices = @transform_5, window_bounds = array<i64: 32, 128>}, {pipeline_mode = #tpu.pipeline_mode<synchronous>, transform_indices = @transform_6, window_bounds = array<i64: 32, 128>}, {pipeline_mode = #tpu.pipeline_mode<synchronous>, transform_indices = @transform_7, window_bounds = array<i64: 64, 128>}, {pipeline_mode = #tpu.pipeline_mode<synchronous>, transform_indices = @transform_8, window_bounds = array<i64: 1, 128>}, {pipeline_mode = #tpu.pipeline_mode<synchronous>, transform_indices = @transform_9, window_bounds = array<i64: 1, 128>}, {pipeline_mode = #tpu.pipeline_mode<synchronous>, transform_indices = @transform_10, window_bounds = array<i64: 1, 128>}, {transform_indices = @transform_11, window_bounds = array<i64: 1, 16, 128>}]} {
    %c0_i32 = arith.constant 0 : i32
    %0 = arith.cmpi eq, %arg1, %c0_i32 : i32
    %1 = arith.extui %0 : i1 to i32
    %c0_i32_0 = arith.constant 0 : i32
    %2 = arith.cmpi ne, %1, %c0_i32_0 : i32
    scf.if %2 {
      %cst_34 = arith.constant 0.000000e+00 : f32
      %65 = vector.broadcast %cst_34 : f32 to vector<16x32xf32>
      %c0_35 = arith.constant 0 : index
      %c0_36 = arith.constant 0 : index
      %66 = vector.load %arg16[%c0_35, %c0_36] : memref<16x32xf32, #tpu.memory_space<vmem>>, vector<16x32xf32>
      tpu.vector_store %arg16[%c0_35, %c0_36], %65 {strides = array<i32>} : memref<16x32xf32, #tpu.memory_space<vmem>>, vector<16x32xf32>,
      %cst_37 = arith.constant 0.000000e+00 : f32
      %67 = vector.broadcast %cst_37 : f32 to vector<16x1xf32>
      %c0_38 = arith.constant 0 : index
      %c0_39 = arith.constant 0 : index
      %68 = vector.load %arg17[%c0_38, %c0_39] : memref<16x1xf32, #tpu.memory_space<vmem>>, vector<16x1xf32>
      tpu.vector_store %arg17[%c0_38, %c0_39], %67 {strides = array<i32>} : memref<16x1xf32, #tpu.memory_space<vmem>>, vector<16x1xf32>,
    } else {
    }
    %c0 = arith.constant 0 : index
    %c0_1 = arith.constant 0 : index
    %c0_2 = arith.constant 0 : index
    %c0_3 = arith.constant 0 : index
    %3 = vector.load %arg2[%c0, %c0_1, %c0_2, %c0_3] : memref<1x8x16x32xbf16, #tpu.memory_space<vmem>>, vector<1x8x16x32xbf16>
    %4 = vector.shape_cast %3 : vector<1x8x16x32xbf16> to vector<128x32xbf16>
    %5 = arith.extf %4 : vector<128x32xbf16> to vector<128x32xf32>
    %cst = arith.constant dense<0.000000e+00> : vector<128xf32>
    %6 = vector.multi_reduction <add>, %5, %cst [1] : vector<128x32xf32> to vector<128xf32>
    %7 = vector.shape_cast %6 : vector<128xf32> to vector<128x1xf32>
    %cst_4 = arith.constant 3.200000e+01 : f32
    %8 = vector.broadcast %cst_4 : f32 to vector<128x1xf32>
    %9 = arith.divf %7, %8 : vector<128x1xf32>
    %10 = arith.mulf %5, %5 : vector<128x32xf32>
    %cst_5 = arith.constant dense<0.000000e+00> : vector<128xf32>
    %11 = vector.multi_reduction <add>, %10, %cst_5 [1] : vector<128x32xf32> to vector<128xf32>
    %12 = vector.shape_cast %11 : vector<128xf32> to vector<128x1xf32>
    %cst_6 = arith.constant 3.200000e+01 : f32
    %13 = vector.broadcast %cst_6 : f32 to vector<128x1xf32>
    %14 = arith.divf %12, %13 : vector<128x1xf32>
    %15 = arith.mulf %9, %9 : vector<128x1xf32>
    %16 = arith.subf %14, %15 : vector<128x1xf32>
    %cst_7 = arith.constant 0.000000e+00 : f32
    %17 = vector.broadcast %cst_7 : f32 to vector<128x1xf32>
    %18 = arith.maximumf %16, %17 : vector<128x1xf32>
    %19 = vector.broadcast %9 : vector<128x1xf32> to vector<128x32xf32>
    %20 = arith.subf %5, %19 : vector<128x32xf32>
    %cst_8 = arith.constant 9.99999974E-6 : f32
    %21 = vector.broadcast %cst_8 : f32 to vector<128x1xf32>
    %22 = arith.addf %18, %21 : vector<128x1xf32>
    %23 = math.rsqrt %22 : vector<128x1xf32>
    %24 = vector.broadcast %23 : vector<128x1xf32> to vector<128x32xf32>
    %25 = arith.mulf %20, %24 : vector<128x32xf32>
    %26 = arith.truncf %25 : vector<128x32xf32> to vector<128x32xbf16>
    %c0_9 = arith.constant 0 : index
    %c0_10 = arith.constant 0 : index
    %27 = vector.load %arg5[%c0_9, %c0_10] : memref<32x32xbf16, #tpu.memory_space<vmem>>, vector<32x32xbf16>
    %cst_11 = arith.constant dense<0.000000e+00> : vector<128x32xf32>
    %28 = tpu.matmul %26, %27, %cst_11 {dimension_numbers = #tpu.dot_dimension_numbers<[1], [0], [0], [1], [0, 0, 1, 1], [], []>} : vector<128x32xbf16>, vector<32x32xbf16>, vector<128x32xf32> -> vector<128x32xf32>
    %c0_12 = arith.constant 0 : index
    %c0_13 = arith.constant 0 : index
    %29 = vector.load %arg6[%c0_12, %c0_13] : memref<1x32xf32, #tpu.memory_space<vmem>>, vector<1x32xf32>
    %30 = vector.broadcast %29 : vector<1x32xf32> to vector<128x32xf32>
    %31 = arith.addf %28, %30 : vector<128x32xf32>
    %cst_14 = arith.constant 0.000000e+00 : f32
    %32 = vector.broadcast %cst_14 : f32 to vector<128x32xf32>
    %33 = arith.maximumf %31, %32 : vector<128x32xf32>
    %c0_15 = arith.constant 0 : index
    %c0_16 = arith.constant 0 : index
    %c0_17 = arith.constant 0 : index
    %34 = vector.load %arg3[%c0_15, %c0_16, %c0_17] : memref<1x8x16xf32, #tpu.memory_space<vmem>>, vector<1x8x16xf32>
    %35 = vector.shape_cast %34 : vector<1x8x16xf32> to vector<8x16xf32>
    %36 = vector.shape_cast %35 : vector<8x16xf32> to vector<8x16x1xf32>
    %37 = vector.shape_cast %33 : vector<128x32xf32> to vector<8x16x32xf32>
    %38 = vector.broadcast %36 : vector<8x16x1xf32> to vector<8x16x32xf32>
    %39 = arith.mulf %37, %38 : vector<8x16x32xf32>
    %cst_18 = arith.constant dense<0.000000e+00> : vector<8xf32>
    %40 = vector.multi_reduction <add>, %35, %cst_18 [1] : vector<8x16xf32> to vector<8xf32>
    %41 = vector.shape_cast %40 : vector<8xf32> to vector<8x1xf32>
    %cst_19 = arith.constant 1.000000e+00 : f32
    %42 = vector.broadcast %cst_19 : f32 to vector<8x1xf32>
    %43 = arith.maximumf %41, %42 : vector<8x1xf32>
    %c8_i32 = arith.constant 8 : i32
    %44 = arith.muli %arg1, %c8_i32 : i32
    %45 = tpu.assume_multiple %44, 8 : i32
    %cst_20 = arith.constant dense<0.000000e+00> : vector<8x32xf32>
    %46 = vector.multi_reduction <add>, %39, %cst_20 [1] : vector<8x16x32xf32> to vector<8x32xf32>
    %47 = vector.broadcast %43 : vector<8x1xf32> to vector<8x32xf32>
    %48 = arith.divf %46, %47 : vector<8x32xf32>
    %49 = arith.index_cast %45 : i32 to index
    %c0_21 = arith.constant 0 : index
    %50 = vector.load %arg14[%49, %c0_21] : memref<16x32xf32, #tpu.memory_space<vmem>>, vector<8x32xf32>
    tpu.vector_store %arg14[%49, %c0_21], %48 {strides = array<i32>} : memref<16x32xf32, #tpu.memory_space<vmem>>, vector<8x32xf32>,
    %51 = arith.divf %41, %43 : vector<8x1xf32>
    %52 = arith.index_cast %45 : i32 to index
    %c0_22 = arith.constant 0 : index
    %53 = vector.load %arg15[%52, %c0_22] : memref<16x1xf32, #tpu.memory_space<vmem>>, vector<8x1xf32>
    tpu.vector_store %arg15[%52, %c0_22], %51 {strides = array<i32>} : memref<16x1xf32, #tpu.memory_space<vmem>>, vector<8x1xf32>,
    %c0_23 = arith.constant 0 : index
    %c0_24 = arith.constant 0 : index
    %54 = vector.load %arg16[%c0_23, %c0_24] : memref<16x32xf32, #tpu.memory_space<vmem>>, vector<16x32xf32>
    %cst_25 = arith.constant dense<0.000000e+00> : vector<16x32xf32>
    %55 = vector.multi_reduction <add>, %39, %cst_25 [0] : vector<8x16x32xf32> to vector<16x32xf32>
    %56 = arith.addf %54, %55 : vector<16x32xf32>
    %c0_26 = arith.constant 0 : index
    %c0_27 = arith.constant 0 : index
    %57 = vector.load %arg16[%c0_26, %c0_27] : memref<16x32xf32, #tpu.memory_space<vmem>>, vector<16x32xf32>
    tpu.vector_store %arg16[%c0_26, %c0_27], %56 {strides = array<i32>} : memref<16x32xf32, #tpu.memory_space<vmem>>, vector<16x32xf32>,
    %c0_28 = arith.constant 0 : index
    %c0_29 = arith.constant 0 : index
    %58 = vector.load %arg17[%c0_28, %c0_29] : memref<16x1xf32, #tpu.memory_space<vmem>>, vector<16x1xf32>
    %cst_30 = arith.constant dense<0.000000e+00> : vector<16x1xf32>
    %59 = vector.multi_reduction <add>, %36, %cst_30 [0] : vector<8x16x1xf32> to vector<16x1xf32>
    %60 = arith.addf %58, %59 : vector<16x1xf32>
    %c0_31 = arith.constant 0 : index
    %c0_32 = arith.constant 0 : index
    %61 = vector.load %arg17[%c0_31, %c0_32] : memref<16x1xf32, #tpu.memory_space<vmem>>, vector<16x1xf32>
    tpu.vector_store %arg17[%c0_31, %c0_32], %60 {strides = array<i32>} : memref<16x1xf32, #tpu.memory_space<vmem>>, vector<16x1xf32>,
    %c1_i32 = arith.constant 1 : i32
    %62 = arith.cmpi eq, %arg1, %c1_i32 : i32
    %63 = arith.extui %62 : i1 to i32
    %c0_i32_33 = arith.constant 0 : i32
    %64 = arith.cmpi ne, %63, %c0_i32_33 : i32
    scf.if %64 {
      %c0_34 = arith.constant 0 : index
      %c0_35 = arith.constant 0 : index
      %65 = vector.load %arg17[%c0_34, %c0_35] : memref<16x1xf32, #tpu.memory_space<vmem>>, vector<16x1xf32>
      %cst_36 = arith.constant 1.000000e+00 : f32
      %66 = vector.broadcast %cst_36 : f32 to vector<16x1xf32>
      %67 = arith.maximumf %65, %66 : vector<16x1xf32>
      %c0_37 = arith.constant 0 : index
      %c0_38 = arith.constant 0 : index
      %68 = vector.load %arg17[%c0_37, %c0_38] : memref<16x1xf32, #tpu.memory_space<vmem>>, vector<16x1xf32>
      %69 = arith.divf %68, %67 : vector<16x1xf32>
      %c0_39 = arith.constant 0 : index
      %c0_40 = arith.constant 0 : index
      %70 = vector.load %arg16[%c0_39, %c0_40] : memref<16x32xf32, #tpu.memory_space<vmem>>, vector<16x32xf32>
      %71 = vector.broadcast %67 : vector<16x1xf32> to vector<16x32xf32>
      %72 = arith.divf %70, %71 : vector<16x32xf32>
      %c0_41 = arith.constant 0 : index
      %c0_42 = arith.constant 0 : index
      %c0_43 = arith.constant 0 : index
      %73 = vector.load %arg4[%c0_41, %c0_42, %c0_43] : memref<1x16x64xf32, #tpu.memory_space<vmem>>, vector<1x16x64xf32>
      %74 = vector.shape_cast %73 : vector<1x16x64xf32> to vector<16x64xf32>
      %c0_44 = arith.constant 0 : index
      %c0_45 = arith.constant 0 : index
      %75 = vector.load %arg14[%c0_44, %c0_45] : memref<16x32xf32, #tpu.memory_space<vmem>>, vector<16x32xf32>
      %c0_46 = arith.constant 0 : index
      %c0_47 = arith.constant 0 : index
      %76 = vector.load %arg7[%c0_46, %c0_47] : memref<32x128xf32, #tpu.memory_space<vmem>>, vector<32x128xf32>
      %cst_48 = arith.constant dense<0.000000e+00> : vector<16x128xf32>
      %77 = tpu.matmul %75, %76, %cst_48 {dimension_numbers = #tpu.dot_dimension_numbers<[1], [0], [0], [1], [0, 0, 1, 1], [], []>} : vector<16x32xf32>, vector<32x128xf32>, vector<16x128xf32> -> vector<16x128xf32>
      %c0_49 = arith.constant 0 : index
      %c0_50 = arith.constant 0 : index
      %78 = vector.load %arg8[%c0_49, %c0_50] : memref<32x128xf32, #tpu.memory_space<vmem>>, vector<32x128xf32>
      %cst_51 = arith.constant dense<0.000000e+00> : vector<16x128xf32>
      %79 = tpu.matmul %72, %78, %cst_51 {dimension_numbers = #tpu.dot_dimension_numbers<[1], [0], [0], [1], [0, 0, 1, 1], [], []>} : vector<16x32xf32>, vector<32x128xf32>, vector<16x128xf32> -> vector<16x128xf32>
      %80 = arith.addf %77, %79 : vector<16x128xf32>
      %c0_52 = arith.constant 0 : index
      %c0_53 = arith.constant 0 : index
      %81 = vector.load %arg9[%c0_52, %c0_53] : memref<64x128xf32, #tpu.memory_space<vmem>>, vector<64x128xf32>
      %cst_54 = arith.constant dense<0.000000e+00> : vector<16x128xf32>
      %82 = tpu.matmul %74, %81, %cst_54 {dimension_numbers = #tpu.dot_dimension_numbers<[1], [0], [0], [1], [0, 0, 1, 1], [], []>} : vector<16x64xf32>, vector<64x128xf32>, vector<16x128xf32> -> vector<16x128xf32>
      %83 = arith.addf %80, %82 : vector<16x128xf32>
      %c0_55 = arith.constant 0 : index
      %c0_56 = arith.constant 0 : index
      %84 = vector.load %arg15[%c0_55, %c0_56] : memref<16x1xf32, #tpu.memory_space<vmem>>, vector<16x1xf32>
      %c0_57 = arith.constant 0 : index
      %c0_58 = arith.constant 0 : index
      %85 = vector.load %arg10[%c0_57, %c0_58] : memref<1x128xf32, #tpu.memory_space<vmem>>, vector<1x128xf32>
      %86 = vector.broadcast %84 : vector<16x1xf32> to vector<16x128xf32>
      %87 = vector.broadcast %85 : vector<1x128xf32> to vector<16x128xf32>
      %88 = arith.mulf %86, %87 : vector<16x128xf32>
      %c0_59 = arith.constant 0 : index
      %c0_60 = arith.constant 0 : index
      %89 = vector.load %arg11[%c0_59, %c0_60] : memref<1x128xf32, #tpu.memory_space<vmem>>, vector<1x128xf32>
      %90 = vector.broadcast %69 : vector<16x1xf32> to vector<16x128xf32>
      %91 = vector.broadcast %89 : vector<1x128xf32> to vector<16x128xf32>
      %92 = arith.mulf %90, %91 : vector<16x128xf32>
      %93 = arith.addf %88, %92 : vector<16x128xf32>
      %c0_61 = arith.constant 0 : index
      %c0_62 = arith.constant 0 : index
      %94 = vector.load %arg12[%c0_61, %c0_62] : memref<1x128xf32, #tpu.memory_space<vmem>>, vector<1x128xf32>
      %95 = vector.broadcast %94 : vector<1x128xf32> to vector<16x128xf32>
      %96 = arith.addf %93, %95 : vector<16x128xf32>
      %97 = arith.addf %83, %96 : vector<16x128xf32>
      %c0_63 = arith.constant 0 : index
      %c0_64 = arith.constant 0 : index
      %c0_65 = arith.constant 0 : index
      %98 = vector.load %arg13[%c0_63, %c0_64, %c0_65] : memref<1x16x128xf32, #tpu.memory_space<vmem>>, vector<1x16x128xf32>
      %99 = vector.shape_cast %98 : vector<1x16x128xf32> to vector<16x128xf32>
      %100 = vector.shape_cast %97 : vector<16x128xf32> to vector<1x16x128xf32>
      tpu.vector_store %arg13[%c0_63, %c0_64, %c0_65], %100 {strides = array<i32>} : memref<1x16x128xf32, #tpu.memory_space<vmem>>, vector<1x16x128xf32>,
    } else {
    }
    return
  }
  func.func @transform_0(%arg0: i32, %arg1: i32) -> (i32, i32, i32, i32) {
    %c0_i32 = arith.constant 0 : i32
    %c0_i32_0 = arith.constant 0 : i32
    %c0_i32_1 = arith.constant 0 : i32
    return %arg0, %arg1, %c0_i32, %c0_i32_0 : i32, i32, i32, i32
  }
  func.func @transform_1(%arg0: i32, %arg1: i32) -> (i32, i32, i32) {
    %c0_i32 = arith.constant 0 : i32
    %c0_i32_0 = arith.constant 0 : i32
    return %arg0, %arg1, %c0_i32 : i32, i32, i32
  }
  func.func @transform_2(%arg0: i32, %arg1: i32) -> (i32, i32, i32) {
    %c0_i32 = arith.constant 0 : i32
    %c0_i32_0 = arith.constant 0 : i32
    %c0_i32_1 = arith.constant 0 : i32
    return %arg0, %c0_i32, %c0_i32_0 : i32, i32, i32
  }
  func.func @transform_3(%arg0: i32, %arg1: i32) -> (i32, i32) {
    %c0_i32 = arith.constant 0 : i32
    %c0_i32_0 = arith.constant 0 : i32
    %c0_i32_1 = arith.constant 0 : i32
    return %c0_i32, %c0_i32_0 : i32, i32
  }
  func.func @transform_4(%arg0: i32, %arg1: i32) -> (i32, i32) {
    %c0_i32 = arith.constant 0 : i32
    %c0_i32_0 = arith.constant 0 : i32
    %c0_i32_1 = arith.constant 0 : i32
    return %c0_i32, %c0_i32_0 : i32, i32
  }
  func.func @transform_5(%arg0: i32, %arg1: i32) -> (i32, i32) {
    %c0_i32 = arith.constant 0 : i32
    %c0_i32_0 = arith.constant 0 : i32
    %c0_i32_1 = arith.constant 0 : i32
    return %c0_i32, %c0_i32_0 : i32, i32
  }
  func.func @transform_6(%arg0: i32, %arg1: i32) -> (i32, i32) {
    %c0_i32 = arith.constant 0 : i32
    %c0_i32_0 = arith.constant 0 : i32
    %c0_i32_1 = arith.constant 0 : i32
    return %c0_i32, %c0_i32_0 : i32, i32
  }
  func.func @transform_7(%arg0: i32, %arg1: i32) -> (i32, i32) {
    %c0_i32 = arith.constant 0 : i32
    %c0_i32_0 = arith.constant 0 : i32
    %c0_i32_1 = arith.constant 0 : i32
    return %c0_i32, %c0_i32_0 : i32, i32
  }
  func.func @transform_8(%arg0: i32, %arg1: i32) -> (i32, i32) {
    %c0_i32 = arith.constant 0 : i32
    %c0_i32_0 = arith.constant 0 : i32
    %c0_i32_1 = arith.constant 0 : i32
    return %c0_i32, %c0_i32_0 : i32, i32
  }
  func.func @transform_9(%arg0: i32, %arg1: i32) -> (i32, i32) {
    %c0_i32 = arith.constant 0 : i32
    %c0_i32_0 = arith.constant 0 : i32
    %c0_i32_1 = arith.constant 0 : i32
    return %c0_i32, %c0_i32_0 : i32, i32
  }
  func.func @transform_10(%arg0: i32, %arg1: i32) -> (i32, i32) {
    %c0_i32 = arith.constant 0 : i32
    %c0_i32_0 = arith.constant 0 : i32
    %c0_i32_1 = arith.constant 0 : i32
    return %c0_i32, %c0_i32_0 : i32, i32
  }
  func.func @transform_11(%arg0: i32, %arg1: i32) -> (i32, i32, i32) {
    %c0_i32 = arith.constant 0 : i32
    %c0_i32_0 = arith.constant 0 : i32
    %c0_i32_1 = arith.constant 0 : i32
    return %arg0, %c0_i32, %c0_i32_0 : i32, i32, i32
  }
}

</mosaic_0001>

<llo_original>
// kernel: tpu_custom_call.1
$region0: #{tpu_custom_call.1}
  #allocation0 [shape = 'u32[]', space=smem, size = 0x4, offset = 0x4, fixed_abs, tag = 'smem constant byte address 0x4 - core index']
  #allocation1 [shape = 'u32[72,128]{1,0:T(1,128)}', space=vmem, size = 0x9000, scoped, tag = 'internal scratch']
  #allocation2 [shape = 'f32[16,32]{1,0:T(8,128)}', space=vmem, size = 0x2000, scoped, tag = 'scratch operand']
  #allocation3 [shape = 'f32[16,1]{1,0:T(8,128)}', space=vmem, size = 0x2000, scoped, tag = 'scratch operand']
  #allocation4 [shape = 'f32[16,32]{1,0:T(8,128)}', space=vmem, size = 0x2000, scoped, tag = 'scratch operand']
  #allocation5 [shape = 'f32[16,1]{1,0:T(8,128)}', space=vmem, size = 0x2000, scoped, tag = 'scratch operand']
  %s0 = inlined_call_operand.hbm [shape: bf16[2,16,16,32], index: 0, kind: input, shape index: {}]
  %s1 = inlined_call_operand.hbm [shape: f32[2,16,16], index: 1, kind: input, shape index: {}]
  %s2 = inlined_call_operand.hbm [shape: f32[2,16,64], index: 2, kind: input, shape index: {}]
  %s3 = inlined_call_operand.hbm [shape: bf16[32,32], index: 3, kind: input, shape index: {}]
  %s4 = inlined_call_operand.vmem [shape: f32[1,32], index: 4, kind: input, shape index: {}]
  %s5 = inlined_call_operand.hbm [shape: f32[32,128], index: 5, kind: input, shape index: {}]
  %s6 = inlined_call_operand.hbm [shape: f32[32,128], index: 6, kind: input, shape index: {}]
  %s7 = inlined_call_operand.hbm [shape: f32[64,128], index: 7, kind: input, shape index: {}]
  %s8 = inlined_call_operand.vmem [shape: f32[1,128], index: 8, kind: input, shape index: {}]
  %s9 = inlined_call_operand.vmem [shape: f32[1,128], index: 9, kind: input, shape index: {}]
  %s10 = inlined_call_operand.vmem [shape: f32[1,128], index: 10, kind: input, shape index: {}]
  %s11 = inlined_call_operand.hbm [shape: f32[2,16,128], index: 11, kind: output, shape index: {}]
  %s12 = sld [smem:[#allocation0]]
  $region113: #{tpu_custom_call.1} parent=0
    _
  %s14 = ssub.s32 1, %s12
  %s15 = scalar_select 0, %s14, %s12
  $region1: #{tpu_custom_call.1} parent=0
    #allocation6 [shape = 'u8[65536]{0}', space=vmem, size = 0x10000, scoped, tag = 'input window, operand 0']
    #allocation7 [shape = 's32[2]{0}', space=sflag, size = 0x8, scoped, tag = 'scoped memory for tpu_custom_call.1']
    #allocation8 [shape = 's32[2]{0}', space=sflag, size = 0x8, scoped, tag = 'scoped memory for tpu_custom_call.1']
    #allocation9 [shape = 'u8[8192]{0}', space=vmem, size = 0x2000, scoped, tag = 'input window, operand 1']
    #allocation10 [shape = 's32[2]{0}', space=sflag, size = 0x8, scoped, tag = 'scoped memory for tpu_custom_call.1']
    #allocation11 [shape = 'u8[16384]{0}', space=vmem, size = 0x4000, scoped, tag = 'input window, operand 2']
    #allocation12 [shape = 'u8[8192]{0}', space=vmem, size = 0x2000, scoped, tag = 'input window, operand 3, single buffered']
    #allocation13 [shape = 's32[1]{0}', space=sflag, size = 0x4, scoped, tag = 'scoped memory for tpu_custom_call.1']
    #allocation14 [shape = 'u8[16384]{0}', space=vmem, size = 0x4000, scoped, tag = 'input window, operand 5, single buffered']
    #allocation15 [shape = 'u8[16384]{0}', space=vmem, size = 0x4000, scoped, tag = 'input window, operand 6, single buffered']
    #allocation16 [shape = 's32[1]{0}', space=sflag, size = 0x4, scoped, tag = 'scoped memory for tpu_custom_call.1']
    #allocation17 [shape = 'u8[32768]{0}', space=vmem, size = 0x8000, scoped, tag = 'input window, operand 7, single buffered']
    #allocation18 [shape = 'u8[16384]{0}', space=vmem, size = 0x4000, scoped, tag = 'output window, operand 0']
    %16 = vsyncpa [#allocation7], 0
    %s17 = scalar_lea.sflag [#allocation7], 1
    %18 = vsyncpa %s17, 0
    %19 = vsyncpa [#allocation10], 0
    %s20 = scalar_lea.sflag [#allocation10], 1
    %21 = vsyncpa %s20, 0
    %22 = vsyncpa [#allocation13], 0
    %23 = vsyncpa [#allocation16], 0
    %24 = vsyncpa [#allocation8], 0
    %s25 = scalar_lea.sflag [#allocation8], 1
    %26 = vsyncpa %s25, 0
    loop: start=0, step=1, limit=6
    $region2: #{tpu_custom_call.1} parent=1 // loop_pre_header
      _
    $region3: #{tpu_custom_call.1} parent=1 // loop_header
      %s28 = sphi 0, %s32
      %p29 = scmp.ge.s32.totalorder %s28, 6
      %s35 = sphi 0, %s47
      %s36 = sphi 0, %s43
      %s37 = sphi 0, %s35
      %s38 = sphi 0, %s36
      %s39 = sphi 0, %s37
      %s40 = sphi 0, %s38
      %s52 = sphi 0, %s54
      %s55 = sphi 0, %s52
      %s56 = sphi 0, %s55
      %s72 = sphi 0, %s56
      %s80 = sphi 0, %s82
      %s83 = sphi 0, %s80
      %s84 = sphi 0, %s83
      %s100 = sphi 0, %s84
      %s106 = sphi 0, %s108
      %s109 = sphi 0, %s106
      %s110 = sphi 0, %s109
      %s126 = sphi 0, %s110
      %s130 = sphi 0, %s130
      %s132 = sphi 0, %s130
      %s133 = sphi 0, %s132
      %s147 = sphi 0, %s133
      %s151 = sphi 0, %s151
      %s153 = sphi 0, %s151
      %s154 = sphi 0, %s153
      %s168 = sphi 0, %s154
      %s172 = sphi 0, %s172
      %s174 = sphi 0, %s172
      %s175 = sphi 0, %s174
      %s189 = sphi 0, %s175
      %s193 = sphi 0, %s193
      %s195 = sphi 0, %s193
      %s196 = sphi 0, %s195
      %s210 = sphi 0, %s196
      %s214 = sphi 0, %s214
      %s216 = sphi 0, %s214
      %s217 = sphi 0, %s216
      %s231 = sphi 0, %s217
      %s235 = sphi 0, %s235
      %s237 = sphi 0, %s235
      %s238 = sphi 0, %s237
      %s252 = sphi 0, %s238
      %s256 = sphi 0, %s256
      %s258 = sphi 0, %s256
      %s259 = sphi 0, %s258
      %s273 = sphi 0, %s259
      %s277 = sphi 0, %s277
      %s279 = sphi 0, %s277
      %s280 = sphi 0, %s279
      %s294 = sphi 0, %s280
      %s300 = sphi 0, %s302
      %s303 = sphi 0, %s300
      %s304 = sphi 0, %s303
      %s320 = sphi 0, %s304
    $region4: #{tpu_custom_call.1} parent=1 // loop_header_branch
      %31 = sbr.rel (%p29) target = $region8
    $region5: #{tpu_custom_call.1} parent=1 // loop_body
      %s33 = ssub.s32 %s28, 1
      %s34 = ssub.s32 %s28, 2
      %s41 = sadd.s32 1, %s36
      %p42 = scmp.ge.s32.totalorder %s41, 2
      %s43 = scalar_select %p42, 0, %s41
      %s44 = sadd.s32 1, %s35
      %s45 = scalar_select %p42, %s44, %s35
      %p46 = scmp.ge.s32.totalorder %s45, 2
      %s47 = scalar_select %p46, 0, %s45
      %s48 = ssub.s32 %s35, %s47
      %s49 = ssub.s32 %s36, %s43
      %s50 = sor.u32 %s48, %s49
      %p51 = scmp.eq.s32.totalorder %s50, 0
      %s53 = sadd.s32 %s52, 1
      %s54 = scalar_select %p51, %s52, %s53
      %p57 = pneg %p51
      %p58 = scmp.eq.s32.totalorder %s28, 3
      %p59 = por %p57, %p58
      %p60 = scmp.ne.s32.totalorder %s52, %s55
      %p61 = scmp.eq.s32.totalorder %s28, 0
      %p62 = por %p60, %p61
      %p63 = scmp.ne.s32.totalorder %s52, %s55
      %p64 = scmp.eq.s32.totalorder %s33, 3
      %p65 = por %p63, %p64
      %p66 = scmp.ne.s32.totalorder %s55, %s56
      %p67 = scmp.eq.s32.totalorder %s33, 0
      %p68 = por %p66, %p67
      %p69 = scmp.ne.s32.totalorder %s55, %s56
      %p70 = scmp.eq.s32.totalorder %s34, 3
      %p71 = por %p69, %p70
      %p73 = scmp.ne.s32.totalorder %s56, %s72
      %p74 = scmp.eq.s32.totalorder %s34, 0
      %p75 = por %p73, %p74
      %s76 = ssub.s32 %s35, %s47
      %s77 = ssub.s32 %s36, %s43
      %s78 = sor.u32 %s76, %s77
      %p79 = scmp.eq.s32.totalorder %s78, 0
      %s81 = sadd.s32 %s80, 1
      %s82 = scalar_select %p79, %s80, %s81
      %p85 = pneg %p79
      %p86 = scmp.eq.s32.totalorder %s28, 3
      %p87 = por %p85, %p86
      %p88 = scmp.ne.s32.totalorder %s80, %s83
      %p89 = scmp.eq.s32.totalorder %s28, 0
      %p90 = por %p88, %p89
      %p91 = scmp.ne.s32.totalorder %s80, %s83
      %p92 = scmp.eq.s32.totalorder %s33, 3
      %p93 = por %p91, %p92
      %p94 = scmp.ne.s32.totalorder %s83, %s84
      %p95 = scmp.eq.s32.totalorder %s33, 0
      %p96 = por %p94, %p95
      %p97 = scmp.ne.s32.totalorder %s83, %s84
      %p98 = scmp.eq.s32.totalorder %s34, 3
      %p99 = por %p97, %p98
      %p101 = scmp.ne.s32.totalorder %s84, %s100
      %p102 = scmp.eq.s32.totalorder %s34, 0
      %p103 = por %p101, %p102
      %s104 = ssub.s32 %s35, %s47
      %p105 = scmp.eq.s32.totalorder %s104, 0
      %s107 = sadd.s32 %s106, 1
      %s108 = scalar_select %p105, %s106, %s107
      %p111 = pneg %p105
      %p112 = scmp.eq.s32.totalorder %s28, 3
      %p113 = por %p111, %p112
      %p114 = scmp.ne.s32.totalorder %s106, %s109
      %p115 = scmp.eq.s32.totalorder %s28, 0
      %p116 = por %p114, %p115
      %p117 = scmp.ne.s32.totalorder %s106, %s109
      %p118 = scmp.eq.s32.totalorder %s33, 3
      %p119 = por %p117, %p118
      %p120 = scmp.ne.s32.totalorder %s109, %s110
      %p121 = scmp.eq.s32.totalorder %s33, 0
      %p122 = por %p120, %p121
      %p123 = scmp.ne.s32.totalorder %s109, %s110
      %p124 = scmp.eq.s32.totalorder %s34, 3
      %p125 = por %p123, %p124
      %p127 = scmp.ne.s32.totalorder %s110, %s126
      %p128 = scmp.eq.s32.totalorder %s34, 0
      %p129 = por %p127, %p128
      %s131 = sadd.s32 %s130, 1
      %p134 = scmp.eq.s32.totalorder %s28, 3
      %p135 = scmp.ne.s32.totalorder %s130, %s132
      %p136 = scmp.eq.s32.totalorder %s28, 0
      %p137 = por %p135, %p136
      %p138 = scmp.ne.s32.totalorder %s130, %s132
      %p139 = scmp.eq.s32.totalorder %s33, 3
      %p140 = por %p138, %p139
      %p141 = scmp.ne.s32.totalorder %s132, %s133
      %p142 = scmp.eq.s32.totalorder %s33, 0
      %p143 = por %p141, %p142
      %p144 = scmp.ne.s32.totalorder %s132, %s133
      %p145 = scmp.eq.s32.totalorder %s34, 3
      %p146 = por %p144, %p145
      %p148 = scmp.ne.s32.totalorder %s133, %s147
      %p149 = scmp.eq.s32.totalorder %s34, 0
      %p150 = por %p148, %p149
      %s152 = sadd.s32 %s151, 1
      %p155 = scmp.eq.s32.totalorder %s28, 3
      %p156 = scmp.ne.s32.totalorder %s151, %s153
      %p157 = scmp.eq.s32.totalorder %s28, 0
      %p158 = por %p156, %p157
      %p159 = scmp.ne.s32.totalorder %s151, %s153
      %p160 = scmp.eq.s32.totalorder %s33, 3
      %p161 = por %p159, %p160
      %p162 = scmp.ne.s32.totalorder %s153, %s154
      %p163 = scmp.eq.s32.totalorder %s33, 0
      %p164 = por %p162, %p163
      %p165 = scmp.ne.s32.totalorder %s153, %s154
      %p166 = scmp.eq.s32.totalorder %s34, 3
      %p167 = por %p165, %p166
      %p169 = scmp.ne.s32.totalorder %s154, %s168
      %p170 = scmp.eq.s32.totalorder %s34, 0
      %p171 = por %p169, %p170
      %s173 = sadd.s32 %s172, 1
      %p176 = scmp.eq.s32.totalorder %s28, 3
      %p177 = scmp.ne.s32.totalorder %s172, %s174
      %p178 = scmp.eq.s32.totalorder %s28, 0
      %p179 = por %p177, %p178
      %p180 = scmp.ne.s32.totalorder %s172, %s174
      %p181 = scmp.eq.s32.totalorder %s33, 3
      %p182 = por %p180, %p181
      %p183 = scmp.ne.s32.totalorder %s174, %s175
      %p184 = scmp.eq.s32.totalorder %s33, 0
      %p185 = por %p183, %p184
      %p186 = scmp.ne.s32.totalorder %s174, %s175
      %p187 = scmp.eq.s32.totalorder %s34, 3
      %p188 = por %p186, %p187
      %p190 = scmp.ne.s32.totalorder %s175, %s189
      %p191 = scmp.eq.s32.totalorder %s34, 0
      %p192 = por %p190, %p191
      %s194 = sadd.s32 %s193, 1
      %p197 = scmp.eq.s32.totalorder %s28, 3
      %p198 = scmp.ne.s32.totalorder %s193, %s195
      %p199 = scmp.eq.s32.totalorder %s28, 0
      %p200 = por %p198, %p199
      %p201 = scmp.ne.s32.totalorder %s193, %s195
      %p202 = scmp.eq.s32.totalorder %s33, 3
      %p203 = por %p201, %p202
      %p204 = scmp.ne.s32.totalorder %s195, %s196
      %p205 = scmp.eq.s32.totalorder %s33, 0
      %p206 = por %p204, %p205
      %p207 = scmp.ne.s32.totalorder %s195, %s196
      %p208 = scmp.eq.s32.totalorder %s34, 3
      %p209 = por %p207, %p208
      %p211 = scmp.ne.s32.totalorder %s196, %s210
      %p212 = scmp.eq.s32.totalorder %s34, 0
      %p213 = por %p211, %p212
      %s215 = sadd.s32 %s214, 1
      %p218 = scmp.eq.s32.totalorder %s28, 3
      %p219 = scmp.ne.s32.totalorder %s214, %s216
      %p220 = scmp.eq.s32.totalorder %s28, 0
      %p221 = por %p219, %p220
      %p222 = scmp.ne.s32.totalorder %s214, %s216
      %p223 = scmp.eq.s32.totalorder %s33, 3
      %p224 = por %p222, %p223
      %p225 = scmp.ne.s32.totalorder %s216, %s217
      %p226 = scmp.eq.s32.totalorder %s33, 0
      %p227 = por %p225, %p226
      %p228 = scmp.ne.s32.totalorder %s216, %s217
      %p229 = scmp.eq.s32.totalorder %s34, 3
      %p230 = por %p228, %p229
      %p232 = scmp.ne.s32.totalorder %s217, %s231
      %p233 = scmp.eq.s32.totalorder %s34, 0
      %p234 = por %p232, %p233
      %s236 = sadd.s32 %s235, 1
      %p239 = scmp.eq.s32.totalorder %s28, 3
      %p240 = scmp.ne.s32.totalorder %s235, %s237
      %p241 = scmp.eq.s32.totalorder %s28, 0
      %p242 = por %p240, %p241
      %p243 = scmp.ne.s32.totalorder %s235, %s237
      %p244 = scmp.eq.s32.totalorder %s33, 3
      %p245 = por %p243, %p244
      %p246 = scmp.ne.s32.totalorder %s237, %s238
      %p247 = scmp.eq.s32.totalorder %s33, 0
      %p248 = por %p246, %p247
      %p249 = scmp.ne.s32.totalorder %s237, %s238
      %p250 = scmp.eq.s32.totalorder %s34, 3
      %p251 = por %p249, %p250
      %p253 = scmp.ne.s32.totalorder %s238, %s252
      %p254 = scmp.eq.s32.totalorder %s34, 0
      %p255 = por %p253, %p254
      %s257 = sadd.s32 %s256, 1
      %p260 = scmp.eq.s32.totalorder %s28, 3
      %p261 = scmp.ne.s32.totalorder %s256, %s258
      %p262 = scmp.eq.s32.totalorder %s28, 0
      %p263 = por %p261, %p262
      %p264 = scmp.ne.s32.totalorder %s256, %s258
      %p265 = scmp.eq.s32.totalorder %s33, 3
      %p266 = por %p264, %p265
      %p267 = scmp.ne.s32.totalorder %s258, %s259
      %p268 = scmp.eq.s32.totalorder %s33, 0
      %p269 = por %p267, %p268
      %p270 = scmp.ne.s32.totalorder %s258, %s259
      %p271 = scmp.eq.s32.totalorder %s34, 3
      %p272 = por %p270, %p271
      %p274 = scmp.ne.s32.totalorder %s259, %s273
      %p275 = scmp.eq.s32.totalorder %s34, 0
      %p276 = por %p274, %p275
      %s278 = sadd.s32 %s277, 1
      %p281 = scmp.eq.s32.totalorder %s28, 3
      %p282 = scmp.ne.s32.totalorder %s277, %s279
      %p283 = scmp.eq.s32.totalorder %s28, 0
      %p284 = por %p282, %p283
      %p285 = scmp.ne.s32.totalorder %s277, %s279
      %p286 = scmp.eq.s32.totalorder %s33, 3
      %p287 = por %p285, %p286
      %p288 = scmp.ne.s32.totalorder %s279, %s280
      %p289 = scmp.eq.s32.totalorder %s33, 0
      %p290 = por %p288, %p289
      %p291 = scmp.ne.s32.totalorder %s279, %s280
      %p292 = scmp.eq.s32.totalorder %s34, 3
      %p293 = por %p291, %p292
      %p295 = scmp.ne.s32.totalorder %s280, %s294
      %p296 = scmp.eq.s32.totalorder %s34, 0
      %p297 = por %p295, %p296
      %s298 = ssub.s32 %s35, %s47
      %p299 = scmp.eq.s32.totalorder %s298, 0
      %s301 = sadd.s32 %s300, 1
      %s302 = scalar_select %p299, %s300, %s301
      %p305 = pneg %p299
      %p306 = scmp.eq.s32.totalorder %s28, 3
      %p307 = por %p305, %p306
      %p308 = scmp.ne.s32.totalorder %s300, %s303
      %p309 = scmp.eq.s32.totalorder %s28, 0
      %p310 = por %p308, %p309
      %p311 = scmp.ne.s32.totalorder %s300, %s303
      %p312 = scmp.eq.s32.totalorder %s33, 3
      %p313 = por %p311, %p312
      %p314 = scmp.ne.s32.totalorder %s303, %s304
      %p315 = scmp.eq.s32.totalorder %s33, 0
      %p316 = por %p314, %p315
      %p317 = scmp.ne.s32.totalorder %s303, %s304
      %p318 = scmp.eq.s32.totalorder %s34, 3
      %p319 = por %p317, %p318
      %p321 = scmp.ne.s32.totalorder %s304, %s320
      %p322 = scmp.eq.s32.totalorder %s34, 0
      %p323 = por %p321, %p322
      %p324 = scmp.le.s32.totalorder 1, %s28
      %p325 = scmp.lt.s32.totalorder %s28, 5
      %p326 = pnand %p324, %p325
      %p327 = pneg %p326
      // Predicated region
      $region9: #{tpu_custom_call.1} parent=5 // pred_check
        _
      $region10: #{tpu_custom_call.1} parent=5 // pred_check_branch
        %329 = sbr.rel (%p326) target = $region12
      $region11: #{tpu_custom_call.1} parent=5 // pred_region
        %s330 = ssub.s32 %s28, 1
        // Predicated region
        $region13: #{tpu_custom_call.1} parent=11 // pred_check
          %p331 = pneg %p143
        $region14: #{tpu_custom_call.1} parent=11 // pred_check_branch
          %333 = sbr.rel (%p331) target = $region16
        $region15: #{tpu_custom_call.1} parent=11 // pred_region
          %335 = vsyncadd [#allocation13], 0
          %s336 = sshll.u32 %s3, 4
          %s337 = int_to_ptr.hbm [resolvable:$true] %s336
          %s338 = sshll.u32 [#allocation12], 4
          %s339 = int_to_ptr.vmem [resolvable:$true] %s338
          %344 = dma.hbm_to_vmem [thread:$0]  %s337, 256, %s339, [#allocation13], 64, 64, 4
        $region16: #{tpu_custom_call.1} parent=11 // pred_fallthru
          _
        // Predicated region
        $region17: #{tpu_custom_call.1} parent=11 // pred_check
          %p345 = pneg %p164
        $region18: #{tpu_custom_call.1} parent=11 // pred_check_branch
          %347 = sbr.rel (%p345) target = $region20
        $region19: #{tpu_custom_call.1} parent=11 // pred_region
          _
        $region20: #{tpu_custom_call.1} parent=11 // pred_fallthru
          _
        // Predicated region
        $region21: #{tpu_custom_call.1} parent=11 // pred_check
          %p348 = pneg %p185
        $region22: #{tpu_custom_call.1} parent=11 // pred_check_branch
          %350 = sbr.rel (%p348) target = $region24
        $region23: #{tpu_custom_call.1} parent=11 // pred_region
          %352 = vsyncadd [#allocation13], 0
          %s353 = sshll.u32 %s5, 4
          %s354 = int_to_ptr.hbm [resolvable:$true] %s353
          %s355 = sshll.u32 [#allocation14], 4
          %s356 = int_to_ptr.vmem [resolvable:$true] %s355
          %361 = dma.hbm_to_vmem [thread:$0]  %s354, 512, %s356, [#allocation13], 128, 128, 8
        $region24: #{tpu_custom_call.1} parent=11 // pred_fallthru
          _
        // Predicated region
        $region25: #{tpu_custom_call.1} parent=11 // pred_check
          %p362 = pneg %p206
        $region26: #{tpu_custom_call.1} parent=11 // pred_check_branch
          %364 = sbr.rel (%p362) target = $region28
        $region27: #{tpu_custom_call.1} parent=11 // pred_region
          %366 = vsyncadd [#allocation16], 0
          %s367 = sshll.u32 %s6, 4
          %s368 = int_to_ptr.hbm [resolvable:$true] %s367
          %s369 = sshll.u32 [#allocation15], 4
          %s370 = int_to_ptr.vmem [resolvable:$true] %s369
          %375 = dma.hbm_to_vmem [thread:$0]  %s368, 512, %s370, [#allocation16], 128, 128, 8
        $region28: #{tpu_custom_call.1} parent=11 // pred_fallthru
          _
        // Predicated region
        $region29: #{tpu_custom_call.1} parent=11 // pred_check
          %p376 = pneg %p227
        $region30: #{tpu_custom_call.1} parent=11 // pred_check_branch
          %378 = sbr.rel (%p376) target = $region32
        $region31: #{tpu_custom_call.1} parent=11 // pred_region
          %380 = vsyncadd [#allocation16], 0
          %s381 = sshll.u32 %s7, 4
          %s382 = int_to_ptr.hbm [resolvable:$true] %s381
          %s383 = sshll.u32 [#allocation17], 4
          %s384 = int_to_ptr.vmem [resolvable:$true] %s383
          %389 = dma.hbm_to_vmem [thread:$0]  %s382, 1024, %s384, [#allocation16], 128, 128, 8
        $region32: #{tpu_custom_call.1} parent=11 // pred_fallthru
          _
        // Predicated region
        $region33: #{tpu_custom_call.1} parent=11 // pred_check
          %p390 = pneg %p248
        $region34: #{tpu_custom_call.1} parent=11 // pred_check_branch
          %392 = sbr.rel (%p390) target = $region36
        $region35: #{tpu_custom_call.1} parent=11 // pred_region
          _
        $region36: #{tpu_custom_call.1} parent=11 // pred_fallthru
          _
        // Predicated region
        $region37: #{tpu_custom_call.1} parent=11 // pred_check
          %p393 = pneg %p269
        $region38: #{tpu_custom_call.1} parent=11 // pred_check_branch
          %395 = sbr.rel (%p393) target = $region40
        $region39: #{tpu_custom_call.1} parent=11 // pred_region
          _
        $region40: #{tpu_custom_call.1} parent=11 // pred_fallthru
          _
        // Predicated region
        $region41: #{tpu_custom_call.1} parent=11 // pred_check
          %p396 = pneg %p290
        $region42: #{tpu_custom_call.1} parent=11 // pred_check_branch
          %398 = sbr.rel (%p396) target = $region44
        $region43: #{tpu_custom_call.1} parent=11 // pred_region
          _
        $region44: #{tpu_custom_call.1} parent=11 // pred_fallthru
          _
      $region12: #{tpu_custom_call.1} parent=5 // pred_fallthru
        _
      %p399 = scmp.lt.s32.totalorder %s28, 4
      // Predicated region
      $region45: #{tpu_custom_call.1} parent=5 // pred_check
        %p400 = pneg %p399
      $region46: #{tpu_custom_call.1} parent=5 // pred_check_branch
        %402 = sbr.rel (%p400) target = $region48
      $region47: #{tpu_custom_call.1} parent=5 // pred_region
        // Predicated region
        $region49: #{tpu_custom_call.1} parent=47 // pred_check
          %p403 = pneg %p62
        $region50: #{tpu_custom_call.1} parent=47 // pred_check_branch
          %405 = sbr.rel (%p403) target = $region52
        $region51: #{tpu_custom_call.1} parent=47 // pred_region
          %s406 = sand.u32 %s52, 1
          %s407 = scalar_lea.sflag [#allocation7], %s406
          %s408 = sand.u32 %s52, 1
          %s409 = smul.addr %s408, 64
          %s410 = scalar_lea.vmem [#allocation6], %s409
          %s411 = smul.u32 8, %s36
          %413 = vsyncadd %s407, 0
          %s414 = smul.addr %s411, 2
          %s415 = smul.addr %s35, 32
          %s416 = sadd.s32 %s414, %s415
          %s417 = smul.addr %s416, 4
          %s418 = scalar_lea.hbm %s0, %s417
          %s419 = sshll.u32 %s418, 4
          %s420 = int_to_ptr.hbm [resolvable:$true] %s419
          %s421 = sshll.u32 %s410, 4
          %s422 = int_to_ptr.vmem [resolvable:$true] %s421
          %427 = dma.hbm_to_vmem [thread:$0]  %s420, 1024, %s422, %s407, 64, 64, 4
        $region52: #{tpu_custom_call.1} parent=47 // pred_fallthru
          _
        // Predicated region
        $region53: #{tpu_custom_call.1} parent=47 // pred_check
          %p428 = pneg %p90
        $region54: #{tpu_custom_call.1} parent=47 // pred_check_branch
          %430 = sbr.rel (%p428) target = $region56
        $region55: #{tpu_custom_call.1} parent=47 // pred_region
          %s431 = sand.u32 %s28, 1
          %s432 = scalar_lea.sflag [#allocation10], %s431
          %s433 = sand.u32 %s80, 1
          %s434 = smul.addr %s433, 8
          %s435 = scalar_lea.vmem [#allocation9], %s434
          %437 = vsyncadd %s432, 0
          %s438 = smul.addr %s35, 2
          %s439 = sadd.s32 %s36, %s438
          %s440 = smul.addr %s439, 8
          %s441 = scalar_lea.hbm %s1, %s440
          %s443 = sshll.u32 %s441, 4
          %s444 = int_to_ptr.hbm [resolvable:$true] %s443
          %s445 = sshll.u32 %s435, 4
          %s446 = int_to_ptr.vmem [resolvable:$true] %s445
          %448 = dma.hbm_to_vmem [thread:$0]  %s444, 128, %s446, %s432
        $region56: #{tpu_custom_call.1} parent=47 // pred_fallthru
          _
        // Predicated region
        $region57: #{tpu_custom_call.1} parent=47 // pred_check
          %p449 = pneg %p116
        $region58: #{tpu_custom_call.1} parent=47 // pred_check_branch
          %451 = sbr.rel (%p449) target = $region60
        $region59: #{tpu_custom_call.1} parent=47 // pred_region
          %s452 = sand.u32 %s28, 1
          %s453 = scalar_lea.sflag [#allocation10], %s452
          %s454 = sand.u32 %s106, 1
          %s455 = smul.addr %s454, 16
          %s456 = scalar_lea.vmem [#allocation11], %s455
          %458 = vsyncadd %s453, 0
          %s459 = smul.addr %s35, 2
          %s460 = smul.addr %s459, 8
          %s461 = scalar_lea.hbm %s2, %s460
          %s462 = sshll.u32 %s461, 4
          %s463 = int_to_ptr.hbm [resolvable:$true] %s462
          %s464 = sshll.u32 %s456, 4
          %s465 = int_to_ptr.vmem [resolvable:$true] %s464
          %470 = dma.hbm_to_vmem [thread:$0]  %s463, 256, %s465, %s453, 128, 128, 8
        $region60: #{tpu_custom_call.1} parent=47 // pred_fallthru
          _
      $region48: #{tpu_custom_call.1} parent=5 // pred_fallthru
        _
      %p471 = scmp.le.s32.totalorder 1, %s28
      %p472 = scmp.lt.s32.totalorder %s28, 5
      %p473 = pnand %p471, %p472
      %p474 = pneg %p473
      // Predicated region
      $region61: #{tpu_custom_call.1} parent=5 // pred_check
        _
      $region62: #{tpu_custom_call.1} parent=5 // pred_check_branch
        %476 = sbr.rel (%p473) target = $region64
      $region63: #{tpu_custom_call.1} parent=5 // pred_region
        %s477 = ssub.s32 %s28, 1
        %s478 = sand.u32 %s55, 1
        %s479 = scalar_lea.sflag [#allocation7], %s478
        %s480 = sand.u32 %s55, 1
        %s481 = smul.addr %s480, 64
        %s482 = scalar_lea.vmem [#allocation6], %s481
        // Predicated region
        $region65: #{tpu_custom_call.1} parent=63 // pred_check
          %p483 = pneg %p68
        $region66: #{tpu_custom_call.1} parent=63 // pred_check_branch
          %485 = sbr.rel (%p483) target = $region68
        $region67: #{tpu_custom_call.1} parent=63 // pred_region
          %487 = dma.done %s479, 1024
        $region68: #{tpu_custom_call.1} parent=63 // pred_fallthru
          _
        %s488 = sand.u32 %s33, 1
        %s489 = scalar_lea.sflag [#allocation10], %s488
        %s490 = sand.u32 %s83, 1
        %s491 = smul.addr %s490, 8
        %s492 = scalar_lea.vmem [#allocation9], %s491
        // Predicated region
        $region69: #{tpu_custom_call.1} parent=63 // pred_check
          %p493 = pneg %p96
        $region70: #{tpu_custom_call.1} parent=63 // pred_check_branch
          %495 = sbr.rel (%p493) target = $region72
        $region71: #{tpu_custom_call.1} parent=63 // pred_region
          %497 = dma.done %s489, 128
        $region72: #{tpu_custom_call.1} parent=63 // pred_fallthru
          _
        %s498 = sand.u32 %s33, 1
        %s499 = scalar_lea.sflag [#allocation10], %s498
        %s500 = sand.u32 %s109, 1
        %s501 = smul.addr %s500, 16
        %s502 = scalar_lea.vmem [#allocation11], %s501
        // Predicated region
        $region73: #{tpu_custom_call.1} parent=63 // pred_check
          %p503 = pneg %p122
        $region74: #{tpu_custom_call.1} parent=63 // pred_check_branch
          %505 = sbr.rel (%p503) target = $region76
        $region75: #{tpu_custom_call.1} parent=63 // pred_region
          %507 = dma.done %s499, 256
        $region76: #{tpu_custom_call.1} parent=63 // pred_fallthru
          _
        // Predicated region
        $region77: #{tpu_custom_call.1} parent=63 // pred_check
          %p508 = pneg %p143
        $region78: #{tpu_custom_call.1} parent=63 // pred_check_branch
          %510 = sbr.rel (%p508) target = $region80
        $region79: #{tpu_custom_call.1} parent=63 // pred_region
          %512 = dma.done [#allocation13], 256
        $region80: #{tpu_custom_call.1} parent=63 // pred_fallthru
          _
        // Predicated region
        $region81: #{tpu_custom_call.1} parent=63 // pred_check
          %p513 = pneg %p185
        $region82: #{tpu_custom_call.1} parent=63 // pred_check_branch
          %515 = sbr.rel (%p513) target = $region84
        $region83: #{tpu_custom_call.1} parent=63 // pred_region
          %517 = dma.done [#allocation13], 512
        $region84: #{tpu_custom_call.1} parent=63 // pred_fallthru
          _
        // Predicated region
        $region85: #{tpu_custom_call.1} parent=63 // pred_check
          %p518 = pneg %p206
        $region86: #{tpu_custom_call.1} parent=63 // pred_check_branch
          %520 = sbr.rel (%p518) target = $region88
        $region87: #{tpu_custom_call.1} parent=63 // pred_region
          %522 = dma.done [#allocation16], 512
        $region88: #{tpu_custom_call.1} parent=63 // pred_fallthru
          _
        // Predicated region
        $region89: #{tpu_custom_call.1} parent=63 // pred_check
          %p523 = pneg %p227
        $region90: #{tpu_custom_call.1} parent=63 // pred_check_branch
          %525 = sbr.rel (%p523) target = $region92
        $region91: #{tpu_custom_call.1} parent=63 // pred_region
          %527 = dma.done [#allocation16], 1024
        $region92: #{tpu_custom_call.1} parent=63 // pred_fallthru
          _
        %s528 = sand.u32 %s55, 1
        %s529 = scalar_lea.sflag [#allocation7], %s528
        %s530 = sand.u32 %s55, 1
        %s531 = smul.addr %s530, 64
        %s532 = scalar_lea.vmem [#allocation6], %s531
        %p533 = pneg %p68
        %p534 = pneg %p65
        %s535 = sand.u32 %s33, 1
        %s536 = scalar_lea.sflag [#allocation10], %s535
        %s537 = sand.u32 %s83, 1
        %s538 = smul.addr %s537, 8
        %s539 = scalar_lea.vmem [#allocation9], %s538
        %p540 = pneg %p96
        %p541 = pneg %p93
        %s542 = sand.u32 %s33, 1
        %s543 = scalar_lea.sflag [#allocation10], %s542
        %s544 = sand.u32 %s109, 1
        %s545 = smul.addr %s544, 16
        %s546 = scalar_lea.vmem [#allocation11], %s545
        %p547 = pneg %p122
        %p548 = pneg %p119
        %p549 = pneg %p143
        %p550 = pneg %p140
        %p551 = pneg %p164
        %p552 = pneg %p161
        %p553 = pneg %p185
        %p554 = pneg %p182
        %p555 = pneg %p206
        %p556 = pneg %p203
        %p557 = pneg %p227
        %p558 = pneg %p224
        %p559 = pneg %p248
        %p560 = pneg %p245
        %p561 = pneg %p269
        %p562 = pneg %p266
        %p563 = pneg %p290
        %p564 = pneg %p287
        %p565 = pneg %p316
        %p566 = pneg %p313
        %s567 = sand.u32 %s303, 1
        %s568 = scalar_lea.sflag [#allocation8], %s567
        %s569 = sand.u32 %s303, 1
        %s570 = smul.addr %s569, 16
        %s571 = scalar_lea.vmem [#allocation18], %s570
        %s572 = smul.u32 8, %s38
        %p574 = scmp.eq.s32.totalorder %s38, 0
        // Predicated region
        $region93: #{tpu_custom_call.1} parent=63 // pred_check
          %p575 = pneg %p574
        $region94: #{tpu_custom_call.1} parent=63 // pred_check_branch
          %577 = sbr.rel (%p575) target = $region96
        $region95: #{tpu_custom_call.1} parent=63 // pred_region
          %vm578 = vcmask 261120
          %579 = vst.msk [vmem:[#allocation4] sm:$0xff] %vm578, 0.0
          %580 = vst.msk [vmem:[#allocation4 + $0x8] sm:$0xff] %vm578, 0.0
          %vm581 = vcmask 7168
          %582 = vst.msk [vmem:[#allocation5] sm:$0xff] %vm581, 0.0
          %583 = vst.msk [vmem:[#allocation5 + $0x8] sm:$0xff] %vm581, 0.0
        $region96: #{tpu_custom_call.1} parent=63 // pred_fallthru
          _
        %v584 = vld [vmem:[%s482] sm:$0xf]
        %v585 = vld [vmem:[%s482 + $0x4] sm:$0xf]
        %v586 = vld [vmem:[%s482 + $0x8] sm:$0xf]
        %v587 = vld [vmem:[%s482 + $0xc] sm:$0xf]
        %v588 = vld [vmem:[%s482 + $0x10] sm:$0xf]
        %v589 = vld [vmem:[%s482 + $0x14] sm:$0xf]
        %v590 = vld [vmem:[%s482 + $0x18] sm:$0xf]
        %v591 = vld [vmem:[%s482 + $0x1c] sm:$0xf]
        %v592 = vld [vmem:[%s482 + $0x20] sm:$0xf]
        %v593 = vld [vmem:[%s482 + $0x24] sm:$0xf]
        %v594 = vld [vmem:[%s482 + $0x28] sm:$0xf]
        %v595 = vld [vmem:[%s482 + $0x2c] sm:$0xf]
        %v596 = vld [vmem:[%s482 + $0x30] sm:$0xf]
        %v597 = vld [vmem:[%s482 + $0x34] sm:$0xf]
        %v598 = vld [vmem:[%s482 + $0x38] sm:$0xf]
        %v599 = vld [vmem:[%s482 + $0x3c] sm:$0xf]
        %v600 = vunpack.c.l.bf16 %v584
        %v601 = vunpack.c.l.bf16 %v585
        %v602 = vunpack.c.l.bf16 %v586
        %v603 = vunpack.c.l.bf16 %v587
        %v604 = vunpack.c.l.bf16 %v588
        %v605 = vunpack.c.l.bf16 %v589
        %v606 = vunpack.c.l.bf16 %v590
        %v607 = vunpack.c.l.bf16 %v591
        %v608 = vunpack.c.l.bf16 %v592
        %v609 = vunpack.c.l.bf16 %v593
        %v610 = vunpack.c.l.bf16 %v594
        %v611 = vunpack.c.l.bf16 %v595
        %v612 = vunpack.c.l.bf16 %v596
        %v613 = vunpack.c.l.bf16 %v597
        %v614 = vunpack.c.l.bf16 %v598
        %v615 = vunpack.c.l.bf16 %v599
        %vm616 = vcmask 261120
        %v617 = vsel %vm616, %v600, 0.0
        %618 = vadd.xlane.f32.xlu0 %v617
        %v619 = vpop.xlane.xlu0 %618
        %v620 = vsel %vm616, %v601, 0.0
        %621 = vadd.xlane.f32.xlu0 %v620
        %v622 = vpop.xlane.xlu0 %621
        %v623 = vsel %vm616, %v602, 0.0
        %624 = vadd.xlane.f32.xlu0 %v623
        %v625 = vpop.xlane.xlu0 %624
        %v626 = vsel %vm616, %v603, 0.0
        %627 = vadd.xlane.f32.xlu0 %v626
        %v628 = vpop.xlane.xlu0 %627
        %v629 = vsel %vm616, %v604, 0.0
        %630 = vadd.xlane.f32.xlu0 %v629
        %v631 = vpop.xlane.xlu0 %630
        %v632 = vsel %vm616, %v605, 0.0
        %633 = vadd.xlane.f32.xlu0 %v632
        %v634 = vpop.xlane.xlu0 %633
        %v635 = vsel %vm616, %v606, 0.0
        %636 = vadd.xlane.f32.xlu0 %v635
        %v637 = vpop.xlane.xlu0 %636
        %v638 = vsel %vm616, %v607, 0.0
        %639 = vadd.xlane.f32.xlu0 %v638
        %v640 = vpop.xlane.xlu0 %639
        %v641 = vsel %vm616, %v608, 0.0
        %642 = vadd.xlane.f32.xlu0 %v641
        %v643 = vpop.xlane.xlu0 %642
        %v644 = vsel %vm616, %v609, 0.0
        %645 = vadd.xlane.f32.xlu0 %v644
        %v646 = vpop.xlane.xlu0 %645
        %v647 = vsel %vm616, %v610, 0.0
        %648 = vadd.xlane.f32.xlu0 %v647
        %v649 = vpop.xlane.xlu0 %648
        %v650 = vsel %vm616, %v611, 0.0
        %651 = vadd.xlane.f32.xlu0 %v650
        %v652 = vpop.xlane.xlu0 %651
        %v653 = vsel %vm616, %v612, 0.0
        %654 = vadd.xlane.f32.xlu0 %v653
        %v655 = vpop.xlane.xlu0 %654
        %v656 = vsel %vm616, %v613, 0.0
        %657 = vadd.xlane.f32.xlu0 %v656
        %v658 = vpop.xlane.xlu0 %657
        %v659 = vsel %vm616, %v614, 0.0
        %660 = vadd.xlane.f32.xlu0 %v659
        %v661 = vpop.xlane.xlu0 %660
        %v662 = vsel %vm616, %v615, 0.0
        %663 = vadd.xlane.f32.xlu0 %v662
        %v664 = vpop.xlane.xlu0 %663
        %v665 = vrcp.pop 32.0
        %v666 = vmul.f32 32.0, %v665
        %v667 = vsub.f32 1.0, %v666
        %v668 = vmul.f32 %v665, %v667
        %v669 = vadd.f32 %v665, %v668
        %vm670 = vweird.f32 %v665
        %v671 = vsel %vm670, %v665, %v669
        %v672 = vmul.f32 %v619, %v671
        %v673 = vmul.f32 %v622, %v671
        %v674 = vmul.f32 %v625, %v671
        %v675 = vmul.f32 %v628, %v671
        %v676 = vmul.f32 %v631, %v671
        %v677 = vmul.f32 %v634, %v671
        %v678 = vmul.f32 %v637, %v671
        %v679 = vmul.f32 %v640, %v671
        %v680 = vmul.f32 %v643, %v671
        %v681 = vmul.f32 %v646, %v671
        %v682 = vmul.f32 %v649, %v671
        %v683 = vmul.f32 %v652, %v671
        %v684 = vmul.f32 %v655, %v671
        %v685 = vmul.f32 %v658, %v671
        %v686 = vmul.f32 %v661, %v671
        %v687 = vmul.f32 %v664, %v671
        %v688 = vmul.f32 %v600, %v600
        %v689 = vmul.f32 %v601, %v601
        %v690 = vmul.f32 %v602, %v602
        %v691 = vmul.f32 %v603, %v603
        %v692 = vmul.f32 %v604, %v604
        %v693 = vmul.f32 %v605, %v605
        %v694 = vmul.f32 %v606, %v606
        %v695 = vmul.f32 %v607, %v607
        %v696 = vmul.f32 %v608, %v608
        %v697 = vmul.f32 %v609, %v609
        %v698 = vmul.f32 %v610, %v610
        %v699 = vmul.f32 %v611, %v611
        %v700 = vmul.f32 %v612, %v612
        %v701 = vmul.f32 %v613, %v613
        %v702 = vmul.f32 %v614, %v614
        %v703 = vmul.f32 %v615, %v615
        %v704 = vsel %vm616, %v688, 0.0
        %705 = vadd.xlane.f32.xlu0 %v704
        %v706 = vpop.xlane.xlu0 %705
        %v707 = vsel %vm616, %v689, 0.0
        %708 = vadd.xlane.f32.xlu0 %v707
        %v709 = vpop.xlane.xlu0 %708
        %v710 = vsel %vm616, %v690, 0.0
        %711 = vadd.xlane.f32.xlu0 %v710
        %v712 = vpop.xlane.xlu0 %711
        %v713 = vsel %vm616, %v691, 0.0
        %714 = vadd.xlane.f32.xlu0 %v713
        %v715 = vpop.xlane.xlu0 %714
        %v716 = vsel %vm616, %v692, 0.0
        %717 = vadd.xlane.f32.xlu0 %v716
        %v718 = vpop.xlane.xlu0 %717
        %v719 = vsel %vm616, %v693, 0.0
        %720 = vadd.xlane.f32.xlu0 %v719
        %v721 = vpop.xlane.xlu0 %720
        %v722 = vsel %vm616, %v694, 0.0
        %723 = vadd.xlane.f32.xlu0 %v722
        %v724 = vpop.xlane.xlu0 %723
        %v725 = vsel %vm616, %v695, 0.0
        %726 = vadd.xlane.f32.xlu0 %v725
        %v727 = vpop.xlane.xlu0 %726
        %v728 = vsel %vm616, %v696, 0.0
        %729 = vadd.xlane.f32.xlu0 %v728
        %v730 = vpop.xlane.xlu0 %729
        %v731 = vsel %vm616, %v697, 0.0
        %732 = vadd.xlane.f32.xlu0 %v731
        %v733 = vpop.xlane.xlu0 %732
        %v734 = vsel %vm616, %v698, 0.0
        %735 = vadd.xlane.f32.xlu0 %v734
        %v736 = vpop.xlane.xlu0 %735
        %v737 = vsel %vm616, %v699, 0.0
        %738 = vadd.xlane.f32.xlu0 %v737
        %v739 = vpop.xlane.xlu0 %738
        %v740 = vsel %vm616, %v700, 0.0
        %741 = vadd.xlane.f32.xlu0 %v740
        %v742 = vpop.xlane.xlu0 %741
        %v743 = vsel %vm616, %v701, 0.0
        %744 = vadd.xlane.f32.xlu0 %v743
        %v745 = vpop.xlane.xlu0 %744
        %v746 = vsel %vm616, %v702, 0.0
        %747 = vadd.xlane.f32.xlu0 %v746
        %v748 = vpop.xlane.xlu0 %747
        %v749 = vsel %vm616, %v703, 0.0
        %750 = vadd.xlane.f32.xlu0 %v749
        %v751 = vpop.xlane.xlu0 %750
        %v752 = vmul.f32 %v706, %v671
        %v753 = vmul.f32 %v709, %v671
        %v754 = vmul.f32 %v712, %v671
        %v755 = vmul.f32 %v715, %v671
        %v756 = vmul.f32 %v718, %v671
        %v757 = vmul.f32 %v721, %v671
        %v758 = vmul.f32 %v724, %v671
        %v759 = vmul.f32 %v727, %v671
        %v760 = vmul.f32 %v730, %v671
        %v761 = vmul.f32 %v733, %v671
        %v762 = vmul.f32 %v736, %v671
        %v763 = vmul.f32 %v739, %v671
        %v764 = vmul.f32 %v742, %v671
        %v765 = vmul.f32 %v745, %v671
        %v766 = vmul.f32 %v748, %v671
        %v767 = vmul.f32 %v751, %v671
        %v768 = vmul.f32 %v672, %v672
        %v769 = vmul.f32 %v673, %v673
        %v770 = vmul.f32 %v674, %v674
        %v771 = vmul.f32 %v675, %v675
        %v772 = vmul.f32 %v676, %v676
        %v773 = vmul.f32 %v677, %v677
        %v774 = vmul.f32 %v678, %v678
        %v775 = vmul.f32 %v679, %v679
        %v776 = vmul.f32 %v680, %v680
        %v777 = vmul.f32 %v681, %v681
        %v778 = vmul.f32 %v682, %v682
        %v779 = vmul.f32 %v683, %v683
        %v780 = vmul.f32 %v684, %v684
        %v781 = vmul.f32 %v685, %v685
        %v782 = vmul.f32 %v686, %v686
        %v783 = vmul.f32 %v687, %v687
        %v784 = vsub.f32 %v752, %v768
        %v785 = vsub.f32 %v753, %v769
        %v786 = vsub.f32 %v754, %v770
        %v787 = vsub.f32 %v755, %v771
        %v788 = vsub.f32 %v756, %v772
        %v789 = vsub.f32 %v757, %v773
        %v790 = vsub.f32 %v758, %v774
        %v791 = vsub.f32 %v759, %v775
        %v792 = vsub.f32 %v760, %v776
        %v793 = vsub.f32 %v761, %v777
        %v794 = vsub.f32 %v762, %v778
        %v795 = vsub.f32 %v763, %v779
        %v796 = vsub.f32 %v764, %v780
        %v797 = vsub.f32 %v765, %v781
        %v798 = vsub.f32 %v766, %v782
        %v799 = vsub.f32 %v767, %v783
        %v800 = vmax.f32 %v784, 0.0
        %v801 = vmax.f32 %v785, 0.0
        %v802 = vmax.f32 %v786, 0.0
        %v803 = vmax.f32 %v787, 0.0
        %v804 = vmax.f32 %v788, 0.0
        %v805 = vmax.f32 %v789, 0.0
        %v806 = vmax.f32 %v790, 0.0
        %v807 = vmax.f32 %v791, 0.0
        %v808 = vmax.f32 %v792, 0.0
        %v809 = vmax.f32 %v793, 0.0
        %v810 = vmax.f32 %v794, 0.0
        %v811 = vmax.f32 %v795, 0.0
        %v812 = vmax.f32 %v796, 0.0
        %v813 = vmax.f32 %v797, 0.0
        %v814 = vmax.f32 %v798, 0.0
        %v815 = vmax.f32 %v799, 0.0
        %v816 = vsub.f32 %v600, %v672
        %v817 = vsub.f32 %v601, %v673
        %v818 = vsub.f32 %v602, %v674
        %v819 = vsub.f32 %v603, %v675
        %v820 = vsub.f32 %v604, %v676
        %v821 = vsub.f32 %v605, %v677
        %v822 = vsub.f32 %v606, %v678
        %v823 = vsub.f32 %v607, %v679
        %v824 = vsub.f32 %v608, %v680
        %v825 = vsub.f32 %v609, %v681
        %v826 = vsub.f32 %v610, %v682
        %v827 = vsub.f32 %v611, %v683
        %v828 = vsub.f32 %v612, %v684
        %v829 = vsub.f32 %v613, %v685
        %v830 = vsub.f32 %v614, %v686
        %v831 = vsub.f32 %v615, %v687
        %v832 = vadd.f32 %v800, 1e-05
        %v833 = vadd.f32 %v801, 1e-05
        %v834 = vadd.f32 %v802, 1e-05
        %v835 = vadd.f32 %v803, 1e-05
        %v836 = vadd.f32 %v804, 1e-05
        %v837 = vadd.f32 %v805, 1e-05
        %v838 = vadd.f32 %v806, 1e-05
        %v839 = vadd.f32 %v807, 1e-05
        %v840 = vadd.f32 %v808, 1e-05
        %v841 = vadd.f32 %v809, 1e-05
        %v842 = vadd.f32 %v810, 1e-05
        %v843 = vadd.f32 %v811, 1e-05
        %v844 = vadd.f32 %v812, 1e-05
        %v845 = vadd.f32 %v813, 1e-05
        %v846 = vadd.f32 %v814, 1e-05
        %v847 = vadd.f32 %v815, 1e-05
        %v848 = vrsqrt.pop %v832
        %v849 = vmul.f32 %v848, %v832
        %v850 = vmul.f32 %v849, %v848
        %v851 = vmul.f32 0.5, %v850
        %v852 = vsub.f32 1.5, %v851
        %v853 = vmul.f32 %v848, %v852
        %vm854 = vweird.f32 %v832
        %vm855 = vweird.f32 %v848
        %vm856 = vmor %vm854, %vm855
        %v857 = vsel %vm856, %v848, %v853
        %v858 = vrsqrt.pop %v833
        %v859 = vmul.f32 %v858, %v833
        %v860 = vmul.f32 %v859, %v858
        %v861 = vmul.f32 0.5, %v860
        %v862 = vsub.f32 1.5, %v861
        %v863 = vmul.f32 %v858, %v862
        %vm864 = vweird.f32 %v833
        %vm865 = vweird.f32 %v858
        %vm866 = vmor %vm864, %vm865
        %v867 = vsel %vm866, %v858, %v863
        %v868 = vrsqrt.pop %v834
        %v869 = vmul.f32 %v868, %v834
        %v870 = vmul.f32 %v869, %v868
        %v871 = vmul.f32 0.5, %v870
        %v872 = vsub.f32 1.5, %v871
        %v873 = vmul.f32 %v868, %v872
        %vm874 = vweird.f32 %v834
        %vm875 = vweird.f32 %v868
        %vm876 = vmor %vm874, %vm875
        %v877 = vsel %vm876, %v868, %v873
        %v878 = vrsqrt.pop %v835
        %v879 = vmul.f32 %v878, %v835
        %v880 = vmul.f32 %v879, %v878
        %v881 = vmul.f32 0.5, %v880
        %v882 = vsub.f32 1.5, %v881
        %v883 = vmul.f32 %v878, %v882
        %vm884 = vweird.f32 %v835
        %vm885 = vweird.f32 %v878
        %vm886 = vmor %vm884, %vm885
        %v887 = vsel %vm886, %v878, %v883
        %v888 = vrsqrt.pop %v836
        %v889 = vmul.f32 %v888, %v836
        %v890 = vmul.f32 %v889, %v888
        %v891 = vmul.f32 0.5, %v890
        %v892 = vsub.f32 1.5, %v891
        %v893 = vmul.f32 %v888, %v892
        %vm894 = vweird.f32 %v836
        %vm895 = vweird.f32 %v888
        %vm896 = vmor %vm894, %vm895
        %v897 = vsel %vm896, %v888, %v893
        %v898 = vrsqrt.pop %v837
        %v899 = vmul.f32 %v898, %v837
        %v900 = vmul.f32 %v899, %v898
        %v901 = vmul.f32 0.5, %v900
        %v902 = vsub.f32 1.5, %v901
        %v903 = vmul.f32 %v898, %v902
        %vm904 = vweird.f32 %v837
        %vm905 = vweird.f32 %v898
        %vm906 = vmor %vm904, %vm905
        %v907 = vsel %vm906, %v898, %v903
        %v908 = vrsqrt.pop %v838
        %v909 = vmul.f32 %v908, %v838
        %v910 = vmul.f32 %v909, %v908
        %v911 = vmul.f32 0.5, %v910
        %v912 = vsub.f32 1.5, %v911
        %v913 = vmul.f32 %v908, %v912
        %vm914 = vweird.f32 %v838
        %vm915 = vweird.f32 %v908
        %vm916 = vmor %vm914, %vm915
        %v917 = vsel %vm916, %v908, %v913
        %v918 = vrsqrt.pop %v839
        %v919 = vmul.f32 %v918, %v839
        %v920 = vmul.f32 %v919, %v918
        %v921 = vmul.f32 0.5, %v920
        %v922 = vsub.f32 1.5, %v921
        %v923 = vmul.f32 %v918, %v922
        %vm924 = vweird.f32 %v839
        %vm925 = vweird.f32 %v918
        %vm926 = vmor %vm924, %vm925
        %v927 = vsel %vm926, %v918, %v923
        %v928 = vrsqrt.pop %v840
        %v929 = vmul.f32 %v928, %v840
        %v930 = vmul.f32 %v929, %v928
        %v931 = vmul.f32 0.5, %v930
        %v932 = vsub.f32 1.5, %v931
        %v933 = vmul.f32 %v928, %v932
        %vm934 = vweird.f32 %v840
        %vm935 = vweird.f32 %v928
        %vm936 = vmor %vm934, %vm935
        %v937 = vsel %vm936, %v928, %v933
        %v938 = vrsqrt.pop %v841
        %v939 = vmul.f32 %v938, %v841
        %v940 = vmul.f32 %v939, %v938
        %v941 = vmul.f32 0.5, %v940
        %v942 = vsub.f32 1.5, %v941
        %v943 = vmul.f32 %v938, %v942
        %vm944 = vweird.f32 %v841
        %vm945 = vweird.f32 %v938
        %vm946 = vmor %vm944, %vm945
        %v947 = vsel %vm946, %v938, %v943
        %v948 = vrsqrt.pop %v842
        %v949 = vmul.f32 %v948, %v842
        %v950 = vmul.f32 %v949, %v948
        %v951 = vmul.f32 0.5, %v950
        %v952 = vsub.f32 1.5, %v951
        %v953 = vmul.f32 %v948, %v952
        %vm954 = vweird.f32 %v842
        %vm955 = vweird.f32 %v948
        %vm956 = vmor %vm954, %vm955
        %v957 = vsel %vm956, %v948, %v953
        %v958 = vrsqrt.pop %v843
        %v959 = vmul.f32 %v958, %v843
        %v960 = vmul.f32 %v959, %v958
        %v961 = vmul.f32 0.5, %v960
        %v962 = vsub.f32 1.5, %v961
        %v963 = vmul.f32 %v958, %v962
        %vm964 = vweird.f32 %v843
        %vm965 = vweird.f32 %v958
        %vm966 = vmor %vm964, %vm965
        %v967 = vsel %vm966, %v958, %v963
        %v968 = vrsqrt.pop %v844
        %v969 = vmul.f32 %v968, %v844
        %v970 = vmul.f32 %v969, %v968
        %v971 = vmul.f32 0.5, %v970
        %v972 = vsub.f32 1.5, %v971
        %v973 = vmul.f32 %v968, %v972
        %vm974 = vweird.f32 %v844
        %vm975 = vweird.f32 %v968
        %vm976 = vmor %vm974, %vm975
        %v977 = vsel %vm976, %v968, %v973
        %v978 = vrsqrt.pop %v845
        %v979 = vmul.f32 %v978, %v845
        %v980 = vmul.f32 %v979, %v978
        %v981 = vmul.f32 0.5, %v980
        %v982 = vsub.f32 1.5, %v981
        %v983 = vmul.f32 %v978, %v982
        %vm984 = vweird.f32 %v845
        %vm985 = vweird.f32 %v978
        %vm986 = vmor %vm984, %vm985
        %v987 = vsel %vm986, %v978, %v983
        %v988 = vrsqrt.pop %v846
        %v989 = vmul.f32 %v988, %v846
        %v990 = vmul.f32 %v989, %v988
        %v991 = vmul.f32 0.5, %v990
        %v992 = vsub.f32 1.5, %v991
        %v993 = vmul.f32 %v988, %v992
        %vm994 = vweird.f32 %v846
        %vm995 = vweird.f32 %v988
        %vm996 = vmor %vm994, %vm995
        %v997 = vsel %vm996, %v988, %v993
        %v998 = vrsqrt.pop %v847
        %v999 = vmul.f32 %v998, %v847
        %v1000 = vmul.f32 %v999, %v998
        %v1001 = vmul.f32 0.5, %v1000
        %v1002 = vsub.f32 1.5, %v1001
        %v1003 = vmul.f32 %v998, %v1002
        %vm1004 = vweird.f32 %v847
        %vm1005 = vweird.f32 %v998
        %vm1006 = vmor %vm1004, %vm1005
        %v1007 = vsel %vm1006, %v998, %v1003
        %v1008 = vmul.f32 %v816, %v857
        %v1009 = vmul.f32 %v817, %v867
        %v1010 = vmul.f32 %v818, %v877
        %v1011 = vmul.f32 %v819, %v887
        %v1012 = vmul.f32 %v820, %v897
        %v1013 = vmul.f32 %v821, %v907
        %v1014 = vmul.f32 %v822, %v917
        %v1015 = vmul.f32 %v823, %v927
        %v1016 = vmul.f32 %v824, %v937
        %v1017 = vmul.f32 %v825, %v947
        %v1018 = vmul.f32 %v826, %v957
        %v1019 = vmul.f32 %v827, %v967
        %v1020 = vmul.f32 %v828, %v977
        %v1021 = vmul.f32 %v829, %v987
        %v1022 = vmul.f32 %v830, %v997
        %v1023 = vmul.f32 %v831, %v1007
        %v1024 = vpack.c.bf16 %v1009, %v1008
        %v1025 = vpack.c.bf16 %v1011, %v1010
        %v1026 = vpack.c.bf16 %v1013, %v1012
        %v1027 = vpack.c.bf16 %v1015, %v1014
        %v1028 = vpack.c.bf16 %v1017, %v1016
        %v1029 = vpack.c.bf16 %v1019, %v1018
        %v1030 = vpack.c.bf16 %v1021, %v1020
        %v1031 = vpack.c.bf16 %v1023, %v1022
        %v1032 = vld [vmem:[#allocation12] sm:$0xf]
        %v1033 = vld [vmem:[#allocation12 + $0x4] sm:$0xf]
        %v1034 = vld [vmem:[#allocation12 + $0x8] sm:$0xf]
        %v1035 = vld [vmem:[#allocation12 + $0xc] sm:$0xf]
        %v1036 = vld [vmem:[%s4] sm:$0x1]
        %v1038 = vperm.slane %v1036, 0
        %v1044 = vunpack.c.l.b16 %v1032
        %v1045 = vunpack.c.l.b16 %v1033
        %v1046 = vunpack.c.l.b16 %v1034
        %v1047 = vunpack.c.l.b16 %v1035
        %v1048 = vpack.c.b16 %v1045, %v1044
        %v1049 = vpack.c.b16 %v1047, %v1046
        %v1053 = vsel %vm616, %v1024, 0
        %v1056 = vsel %vm616, %v1025, 0
        %v1059 = vsel %vm616, %v1026, 0
        %v1062 = vsel %vm616, %v1027, 0
        %v1065 = vsel %vm616, %v1028, 0
        %v1068 = vsel %vm616, %v1029, 0
        %v1071 = vsel %vm616, %v1030, 0
        %v1074 = vsel %vm616, %v1031, 0
        %1076 = vmatpush.bf16.msra.mxu0 0
        %1077 = vmatpush.bf16.msra.mxu0 0
        %1078 = vmatpush.bf16.msra.mxu0 0
        %1079 = vmatpush.bf16.msra.mxu0 0
        %1080 = vmatpush.bf16.msra.mxu0 0
        %1081 = vmatpush.bf16.msra.mxu0 0
        %1082 = vmatpush.bf16.msra.mxu0 %v1049
        %1083 = vmatpush.bf16.msra.mxu0 %v1048
        %1084 = vmatmul.bf16.gmra.mxu0 %v1053
        %v1085 = vpop.f32.mrf.mxu0
        %v1086 = vadd.f32 %v1038, %v1085
        %v1087 = vpop.f32.mrf.mxu0
        %v1088 = vadd.f32 %v1038, %v1087
        %1089 = vmatmul.bf16.gmra.mxu0 %v1056
        %v1090 = vpop.f32.mrf.mxu0
        %v1091 = vadd.f32 %v1038, %v1090
        %v1092 = vpop.f32.mrf.mxu0
        %v1093 = vadd.f32 %v1038, %v1092
        %1094 = vmatmul.bf16.gmra.mxu0 %v1059
        %v1095 = vpop.f32.mrf.mxu0
        %v1096 = vadd.f32 %v1038, %v1095
        %v1097 = vpop.f32.mrf.mxu0
        %v1098 = vadd.f32 %v1038, %v1097
        %1099 = vmatmul.bf16.gmra.mxu0 %v1062
        %v1100 = vpop.f32.mrf.mxu0
        %v1101 = vadd.f32 %v1038, %v1100
        %v1102 = vpop.f32.mrf.mxu0
        %v1103 = vadd.f32 %v1038, %v1102
        %1104 = vmatmul.bf16.gmra.mxu0 %v1065
        %v1105 = vpop.f32.mrf.mxu0
        %v1106 = vadd.f32 %v1038, %v1105
        %v1107 = vpop.f32.mrf.mxu0
        %v1108 = vadd.f32 %v1038, %v1107
        %1109 = vmatmul.bf16.gmra.mxu0 %v1068
        %v1110 = vpop.f32.mrf.mxu0
        %v1111 = vadd.f32 %v1038, %v1110
        %v1112 = vpop.f32.mrf.mxu0
        %v1113 = vadd.f32 %v1038, %v1112
        %1114 = vmatmul.bf16.gmra.mxu0 %v1071
        %v1115 = vpop.f32.mrf.mxu0
        %v1116 = vadd.f32 %v1038, %v1115
        %v1117 = vpop.f32.mrf.mxu0
        %v1118 = vadd.f32 %v1038, %v1117
        %1119 = vmatmul.bf16.gmra.mxu0 %v1074
        %v1120 = vpop.f32.mrf.mxu0
        %v1121 = vadd.f32 %v1038, %v1120
        %v1122 = vpop.f32.mrf.mxu0
        %v1123 = vadd.f32 %v1038, %v1122
        %1124 = vdwg.mxu0
        %v1125 = vmax.f32 %v1086, 0.0
        %v1126 = vmax.f32 %v1088, 0.0
        %v1127 = vmax.f32 %v1091, 0.0
        %v1128 = vmax.f32 %v1093, 0.0
        %v1129 = vmax.f32 %v1096, 0.0
        %v1130 = vmax.f32 %v1098, 0.0
        %v1131 = vmax.f32 %v1101, 0.0
        %v1132 = vmax.f32 %v1103, 0.0
        %v1133 = vmax.f32 %v1106, 0.0
        %v1134 = vmax.f32 %v1108, 0.0
        %v1135 = vmax.f32 %v1111, 0.0
        %v1136 = vmax.f32 %v1113, 0.0
        %v1137 = vmax.f32 %v1116, 0.0
        %v1138 = vmax.f32 %v1118, 0.0
        %v1139 = vmax.f32 %v1121, 0.0
        %v1140 = vmax.f32 %v1123, 0.0
        %v1141 = vld [vmem:[%s492] sm:$0xff]
        %v1142 = vperm.slane %v1141, 0
        %v1143 = vlaneseq
        %v1144 = vshrl.u32 %v1143, 7
        %1146 = vset.pattern.permute.xlu0 %v1144
        %1147 = vperm.xlu0 %1146, %v1142
        %v1148 = vpop.permute.xlu0 %1147
        %v1149 = vlaneseq
        %v1150 = vshrl.u32 %v1149, 7
        %v1151 = vadd.s32 %v1150, 8
        %1152 = vset.pattern.permute.xlu0 %v1151
        %1153 = vperm.xlu0 %1152, %v1142
        %v1154 = vpop.permute.xlu0 %1153
        %v1155 = vperm.slane %v1141, 1
        %v1156 = vlaneseq
        %v1157 = vshrl.u32 %v1156, 7
        %1159 = vset.pattern.permute.xlu0 %v1157
        %1160 = vperm.xlu0 %1159, %v1155
        %v1161 = vpop.permute.xlu0 %1160
        %v1162 = vlaneseq
        %v1163 = vshrl.u32 %v1162, 7
        %v1164 = vadd.s32 %v1163, 8
        %1165 = vset.pattern.permute.xlu0 %v1164
        %1166 = vperm.xlu0 %1165, %v1155
        %v1167 = vpop.permute.xlu0 %1166
        %v1168 = vperm.slane %v1141, 2
        %v1169 = vlaneseq
        %v1170 = vshrl.u32 %v1169, 7
        %1172 = vset.pattern.permute.xlu0 %v1170
        %1173 = vperm.xlu0 %1172, %v1168
        %v1174 = vpop.permute.xlu0 %1173
        %v1175 = vlaneseq
        %v1176 = vshrl.u32 %v1175, 7
        %v1177 = vadd.s32 %v1176, 8
        %1178 = vset.pattern.permute.xlu0 %v1177
        %1179 = vperm.xlu0 %1178, %v1168
        %v1180 = vpop.permute.xlu0 %1179
        %v1181 = vperm.slane %v1141, 3
        %v1182 = vlaneseq
        %v1183 = vshrl.u32 %v1182, 7
        %1185 = vset.pattern.permute.xlu0 %v1183
        %1186 = vperm.xlu0 %1185, %v1181
        %v1187 = vpop.permute.xlu0 %1186
        %v1188 = vlaneseq
        %v1189 = vshrl.u32 %v1188, 7
        %v1190 = vadd.s32 %v1189, 8
        %1191 = vset.pattern.permute.xlu0 %v1190
        %1192 = vperm.xlu0 %1191, %v1181
        %v1193 = vpop.permute.xlu0 %1192
        %v1194 = vperm.slane %v1141, 4
        %v1195 = vlaneseq
        %v1196 = vshrl.u32 %v1195, 7
        %1198 = vset.pattern.permute.xlu0 %v1196
        %1199 = vperm.xlu0 %1198, %v1194
        %v1200 = vpop.permute.xlu0 %1199
        %v1201 = vlaneseq
        %v1202 = vshrl.u32 %v1201, 7
        %v1203 = vadd.s32 %v1202, 8
        %1204 = vset.pattern.permute.xlu0 %v1203
        %1205 = vperm.xlu0 %1204, %v1194
        %v1206 = vpop.permute.xlu0 %1205
        %v1207 = vperm.slane %v1141, 5
        %v1208 = vlaneseq
        %v1209 = vshrl.u32 %v1208, 7
        %1211 = vset.pattern.permute.xlu0 %v1209
        %1212 = vperm.xlu0 %1211, %v1207
        %v1213 = vpop.permute.xlu0 %1212
        %v1214 = vlaneseq
        %v1215 = vshrl.u32 %v1214, 7
        %v1216 = vadd.s32 %v1215, 8
        %1217 = vset.pattern.permute.xlu0 %v1216
        %1218 = vperm.xlu0 %1217, %v1207
        %v1219 = vpop.permute.xlu0 %1218
        %v1220 = vperm.slane %v1141, 6
        %v1221 = vlaneseq
        %v1222 = vshrl.u32 %v1221, 7
        %1224 = vset.pattern.permute.xlu0 %v1222
        %1225 = vperm.xlu0 %1224, %v1220
        %v1226 = vpop.permute.xlu0 %1225
        %v1227 = vlaneseq
        %v1228 = vshrl.u32 %v1227, 7
        %v1229 = vadd.s32 %v1228, 8
        %1230 = vset.pattern.permute.xlu0 %v1229
        %1231 = vperm.xlu0 %1230, %v1220
        %v1232 = vpop.permute.xlu0 %1231
        %v1233 = vperm.slane %v1141, 7
        %v1234 = vlaneseq
        %v1235 = vshrl.u32 %v1234, 7
        %1237 = vset.pattern.permute.xlu0 %v1235
        %1238 = vperm.xlu0 %1237, %v1233
        %v1239 = vpop.permute.xlu0 %1238
        %v1240 = vlaneseq
        %v1241 = vshrl.u32 %v1240, 7
        %v1242 = vadd.s32 %v1241, 8
        %1243 = vset.pattern.permute.xlu0 %v1242
        %1244 = vperm.xlu0 %1243, %v1233
        %v1245 = vpop.permute.xlu0 %1244
        %v1246 = vmul.f32 %v1125, %v1148
        %v1247 = vmul.f32 %v1126, %v1154
        %v1248 = vmul.f32 %v1127, %v1161
        %v1249 = vmul.f32 %v1128, %v1167
        %v1250 = vmul.f32 %v1129, %v1174
        %v1251 = vmul.f32 %v1130, %v1180
        %v1252 = vmul.f32 %v1131, %v1187
        %v1253 = vmul.f32 %v1132, %v1193
        %v1254 = vmul.f32 %v1133, %v1200
        %v1255 = vmul.f32 %v1134, %v1206
        %v1256 = vmul.f32 %v1135, %v1213
        %v1257 = vmul.f32 %v1136, %v1219
        %v1258 = vmul.f32 %v1137, %v1226
        %v1259 = vmul.f32 %v1138, %v1232
        %v1260 = vmul.f32 %v1139, %v1239
        %v1261 = vmul.f32 %v1140, %v1245
        %vm1262 = vcmask 130048
        %v1263 = vsel %vm1262, %v1141, 0.0
        %1264 = vadd.xlane.f32.xlu0 %v1263
        %v1265 = vpop.xlane.xlu0 %1264
        %v1266 = vmax.f32 %v1265, 1.0
        %s1267 = smul.u32 %s38, 8
        %v1268 = vsel %vm616, %v1246, 0.0
        %v1269 = vsel %vm616, %v1247, 0.0
        %v1270 = vadd.f32 %v1268, %v1269
        %v1271 = vrot.slane %v1270, 4
        %v1272 = vadd.f32 %v1270, %v1271
        %v1273 = vrot.slane %v1272, 2
        %v1274 = vadd.f32 %v1272, %v1273
        %v1275 = vrot.slane %v1274, 1
        %v1276 = vadd.f32 %v1274, %v1275
        %v1277 = vsel %vm616, %v1248, 0.0
        %v1278 = vsel %vm616, %v1249, 0.0
        %v1279 = vadd.f32 %v1277, %v1278
        %v1280 = vrot.slane %v1279, 4
        %v1281 = vadd.f32 %v1279, %v1280
        %v1282 = vrot.slane %v1281, 2
        %v1283 = vadd.f32 %v1281, %v1282
        %v1284 = vrot.slane %v1283, 1
        %v1285 = vadd.f32 %v1283, %v1284
        %v1286 = vsel %vm616, %v1250, 0.0
        %v1287 = vsel %vm616, %v1251, 0.0
        %v1288 = vadd.f32 %v1286, %v1287
        %v1289 = vrot.slane %v1288, 4
        %v1290 = vadd.f32 %v1288, %v1289
        %v1291 = vrot.slane %v1290, 2
        %v1292 = vadd.f32 %v1290, %v1291
        %v1293 = vrot.slane %v1292, 1
        %v1294 = vadd.f32 %v1292, %v1293
        %v1295 = vsel %vm616, %v1252, 0.0
        %v1296 = vsel %vm616, %v1253, 0.0
        %v1297 = vadd.f32 %v1295, %v1296
        %v1298 = vrot.slane %v1297, 4
        %v1299 = vadd.f32 %v1297, %v1298
        %v1300 = vrot.slane %v1299, 2
        %v1301 = vadd.f32 %v1299, %v1300
        %v1302 = vrot.slane %v1301, 1
        %v1303 = vadd.f32 %v1301, %v1302
        %v1304 = vsel %vm616, %v1254, 0.0
        %v1305 = vsel %vm616, %v1255, 0.0
        %v1306 = vadd.f32 %v1304, %v1305
        %v1307 = vrot.slane %v1306, 4
        %v1308 = vadd.f32 %v1306, %v1307
        %v1309 = vrot.slane %v1308, 2
        %v1310 = vadd.f32 %v1308, %v1309
        %v1311 = vrot.slane %v1310, 1
        %v1312 = vadd.f32 %v1310, %v1311
        %v1313 = vsel %vm616, %v1256, 0.0
        %v1314 = vsel %vm616, %v1257, 0.0
        %v1315 = vadd.f32 %v1313, %v1314
        %v1316 = vrot.slane %v1315, 4
        %v1317 = vadd.f32 %v1315, %v1316
        %v1318 = vrot.slane %v1317, 2
        %v1319 = vadd.f32 %v1317, %v1318
        %v1320 = vrot.slane %v1319, 1
        %v1321 = vadd.f32 %v1319, %v1320
        %v1322 = vsel %vm616, %v1258, 0.0
        %v1323 = vsel %vm616, %v1259, 0.0
        %v1324 = vadd.f32 %v1322, %v1323
        %v1325 = vrot.slane %v1324, 4
        %v1326 = vadd.f32 %v1324, %v1325
        %v1327 = vrot.slane %v1326, 2
        %v1328 = vadd.f32 %v1326, %v1327
        %v1329 = vrot.slane %v1328, 1
        %v1330 = vadd.f32 %v1328, %v1329
        %v1331 = vsel %vm616, %v1260, 0.0
        %v1332 = vsel %vm616, %v1261, 0.0
        %v1333 = vadd.f32 %v1331, %v1332
        %v1334 = vrot.slane %v1333, 4
        %v1335 = vadd.f32 %v1333, %v1334
        %v1336 = vrot.slane %v1335, 2
        %v1337 = vadd.f32 %v1335, %v1336
        %v1338 = vrot.slane %v1337, 1
        %v1339 = vadd.f32 %v1337, %v1338
        %v1341 = vrot.slane %v1266, 1
        %v1342 = vrot.slane %v1266, 2
        %v1343 = vrot.slane %v1266, 3
        %v1344 = vrot.slane %v1266, 4
        %v1345 = vrot.slane %v1266, 5
        %v1346 = vrot.slane %v1266, 6
        %v1347 = vrot.slane %v1266, 7
        %v1356 = vrcp.pop %v1266
        %v1357 = vmul.f32 %v1266, %v1356
        %v1358 = vsub.f32 1.0, %v1357
        %v1359 = vmul.f32 %v1356, %v1358
        %v1360 = vadd.f32 %v1356, %v1359
        %vm1361 = vweird.f32 %v1266
        %vm1362 = vweird.f32 %v1356
        %vm1363 = vmor %vm1361, %vm1362
        %v1364 = vsel %vm1363, %v1356, %v1360
        %v1365 = vand.u32 2147483647, %v1266
        %vm1366 = vcmp.eq.f32.partialorder %v1365, 8.507059e+37
        %v1367 = vand.u32 %v1266, 2147483648
        %v1368 = vor.u32 1.1754944e-38, %v1367
        %v1369 = vsel %vm1366, %v1368, %v1364
        %v1370 = vmul.f32 %v1276, %v1369
        %v1371 = vrcp.pop %v1341
        %v1372 = vmul.f32 %v1341, %v1371
        %v1373 = vsub.f32 1.0, %v1372
        %v1374 = vmul.f32 %v1371, %v1373
        %v1375 = vadd.f32 %v1371, %v1374
        %vm1376 = vweird.f32 %v1341
        %vm1377 = vweird.f32 %v1371
        %vm1378 = vmor %vm1376, %vm1377
        %v1379 = vsel %vm1378, %v1371, %v1375
        %v1380 = vand.u32 2147483647, %v1341
        %vm1381 = vcmp.eq.f32.partialorder %v1380, 8.507059e+37
        %v1382 = vand.u32 %v1341, 2147483648
        %v1383 = vor.u32 1.1754944e-38, %v1382
        %v1384 = vsel %vm1381, %v1383, %v1379
        %v1385 = vmul.f32 %v1285, %v1384
        %v1386 = vrcp.pop %v1342
        %v1387 = vmul.f32 %v1342, %v1386
        %v1388 = vsub.f32 1.0, %v1387
        %v1389 = vmul.f32 %v1386, %v1388
        %v1390 = vadd.f32 %v1386, %v1389
        %vm1391 = vweird.f32 %v1342
        %vm1392 = vweird.f32 %v1386
        %vm1393 = vmor %vm1391, %vm1392
        %v1394 = vsel %vm1393, %v1386, %v1390
        %v1395 = vand.u32 2147483647, %v1342
        %vm1396 = vcmp.eq.f32.partialorder %v1395, 8.507059e+37
        %v1397 = vand.u32 %v1342, 2147483648
        %v1398 = vor.u32 1.1754944e-38, %v1397
        %v1399 = vsel %vm1396, %v1398, %v1394
        %v1400 = vmul.f32 %v1294, %v1399
        %v1401 = vrcp.pop %v1343
        %v1402 = vmul.f32 %v1343, %v1401
        %v1403 = vsub.f32 1.0, %v1402
        %v1404 = vmul.f32 %v1401, %v1403
        %v1405 = vadd.f32 %v1401, %v1404
        %vm1406 = vweird.f32 %v1343
        %vm1407 = vweird.f32 %v1401
        %vm1408 = vmor %vm1406, %vm1407
        %v1409 = vsel %vm1408, %v1401, %v1405
        %v1410 = vand.u32 2147483647, %v1343
        %vm1411 = vcmp.eq.f32.partialorder %v1410, 8.507059e+37
        %v1412 = vand.u32 %v1343, 2147483648
        %v1413 = vor.u32 1.1754944e-38, %v1412
        %v1414 = vsel %vm1411, %v1413, %v1409
        %v1415 = vmul.f32 %v1303, %v1414
        %v1416 = vrcp.pop %v1344
        %v1417 = vmul.f32 %v1344, %v1416
        %v1418 = vsub.f32 1.0, %v1417
        %v1419 = vmul.f32 %v1416, %v1418
        %v1420 = vadd.f32 %v1416, %v1419
        %vm1421 = vweird.f32 %v1344
        %vm1422 = vweird.f32 %v1416
        %vm1423 = vmor %vm1421, %vm1422
        %v1424 = vsel %vm1423, %v1416, %v1420
        %v1425 = vand.u32 2147483647, %v1344
        %vm1426 = vcmp.eq.f32.partialorder %v1425, 8.507059e+37
        %v1427 = vand.u32 %v1344, 2147483648
        %v1428 = vor.u32 1.1754944e-38, %v1427
        %v1429 = vsel %vm1426, %v1428, %v1424
        %v1430 = vmul.f32 %v1312, %v1429
        %v1431 = vrcp.pop %v1345
        %v1432 = vmul.f32 %v1345, %v1431
        %v1433 = vsub.f32 1.0, %v1432
        %v1434 = vmul.f32 %v1431, %v1433
        %v1435 = vadd.f32 %v1431, %v1434
        %vm1436 = vweird.f32 %v1345
        %vm1437 = vweird.f32 %v1431
        %vm1438 = vmor %vm1436, %vm1437
        %v1439 = vsel %vm1438, %v1431, %v1435
        %v1440 = vand.u32 2147483647, %v1345
        %vm1441 = vcmp.eq.f32.partialorder %v1440, 8.507059e+37
        %v1442 = vand.u32 %v1345, 2147483648
        %v1443 = vor.u32 1.1754944e-38, %v1442
        %v1444 = vsel %vm1441, %v1443, %v1439
        %v1445 = vmul.f32 %v1321, %v1444
        %v1446 = vrcp.pop %v1346
        %v1447 = vmul.f32 %v1346, %v1446
        %v1448 = vsub.f32 1.0, %v1447
        %v1449 = vmul.f32 %v1446, %v1448
        %v1450 = vadd.f32 %v1446, %v1449
        %vm1451 = vweird.f32 %v1346
        %vm1452 = vweird.f32 %v1446
        %vm1453 = vmor %vm1451, %vm1452
        %v1454 = vsel %vm1453, %v1446, %v1450
        %v1455 = vand.u32 2147483647, %v1346
        %vm1456 = vcmp.eq.f32.partialorder %v1455, 8.507059e+37
        %v1457 = vand.u32 %v1346, 2147483648
        %v1458 = vor.u32 1.1754944e-38, %v1457
        %v1459 = vsel %vm1456, %v1458, %v1454
        %v1460 = vmul.f32 %v1330, %v1459
        %v1461 = vrcp.pop %v1347
        %v1462 = vmul.f32 %v1347, %v1461
        %v1463 = vsub.f32 1.0, %v1462
        %v1464 = vmul.f32 %v1461, %v1463
        %v1465 = vadd.f32 %v1461, %v1464
        %vm1466 = vweird.f32 %v1347
        %vm1467 = vweird.f32 %v1461
        %vm1468 = vmor %vm1466, %vm1467
        %v1469 = vsel %vm1468, %v1461, %v1465
        %v1470 = vand.u32 2147483647, %v1347
        %vm1471 = vcmp.eq.f32.partialorder %v1470, 8.507059e+37
        %v1472 = vand.u32 %v1347, 2147483648
        %v1473 = vor.u32 1.1754944e-38, %v1472
        %v1474 = vsel %vm1471, %v1473, %v1469
        %v1475 = vmul.f32 %v1339, %v1474
        %v1484 = vrot.slane %v1385, 7
        %vm1485 = vcmask 1041409
        %v1486 = vsel %vm1485, %v1484, %v1370
        %v1487 = vrot.slane %v1400, 6
        %vm1488 = vcmask 1042434
        %v1489 = vsel %vm1488, %v1487, %v1486
        %v1490 = vrot.slane %v1415, 5
        %vm1491 = vcmask 1043459
        %v1492 = vsel %vm1491, %v1490, %v1489
        %v1493 = vrot.slane %v1430, 4
        %vm1494 = vcmask 1044484
        %v1495 = vsel %vm1494, %v1493, %v1492
        %v1496 = vrot.slane %v1445, 3
        %vm1497 = vcmask 1045509
        %v1498 = vsel %vm1497, %v1496, %v1495
        %v1499 = vrot.slane %v1460, 2
        %vm1500 = vcmask 1046534
        %v1501 = vsel %vm1500, %v1499, %v1498
        %v1502 = vrot.slane %v1475, 1
        %vm1503 = vcmask 1047559
        %v1504 = vsel %vm1503, %v1502, %v1501
        %s1506 = scalar_lea.vmem [#allocation2], %s1267
        %1507 = vst.msk [vmem:[%s1506] sm:$0xff] %vm616, %v1504
        %v1508 = vrcp.pop %v1266
        %v1509 = vmul.f32 %v1266, %v1508
        %v1510 = vsub.f32 1.0, %v1509
        %v1511 = vmul.f32 %v1508, %v1510
        %v1512 = vadd.f32 %v1508, %v1511
        %vm1513 = vweird.f32 %v1266
        %vm1514 = vweird.f32 %v1508
        %vm1515 = vmor %vm1513, %vm1514
        %v1516 = vsel %vm1515, %v1508, %v1512
        %v1517 = vand.u32 2147483647, %v1266
        %vm1518 = vcmp.eq.f32.partialorder %v1517, 8.507059e+37
        %v1519 = vand.u32 %v1266, 2147483648
        %v1520 = vor.u32 1.1754944e-38, %v1519
        %v1521 = vsel %vm1518, %v1520, %v1516
        %v1522 = vmul.f32 %v1265, %v1521
        %s1523 = scalar_lea.vmem [#allocation3], %s1267
        %vm1524 = vcmask 7168
        %1525 = vst.msk [vmem:[%s1523] sm:$0xff] %vm1524, %v1522
        %v1526 = vld [vmem:[#allocation4] sm:$0xff]
        %v1527 = vld [vmem:[#allocation4 + $0x8] sm:$0xff]
        %v1528 = vadd.f32 %v1268, %v1277
        %v1529 = vadd.f32 %v1528, %v1286
        %v1530 = vadd.f32 %v1529, %v1295
        %v1531 = vadd.f32 %v1530, %v1304
        %v1532 = vadd.f32 %v1531, %v1313
        %v1533 = vadd.f32 %v1532, %v1322
        %v1534 = vadd.f32 %v1533, %v1331
        %v1535 = vadd.f32 %v1269, %v1278
        %v1536 = vadd.f32 %v1535, %v1287
        %v1537 = vadd.f32 %v1536, %v1296
        %v1538 = vadd.f32 %v1537, %v1305
        %v1539 = vadd.f32 %v1538, %v1314
        %v1540 = vadd.f32 %v1539, %v1323
        %v1541 = vadd.f32 %v1540, %v1332
        %v1542 = vadd.f32 %v1526, %v1534
        %v1543 = vadd.f32 %v1527, %v1541
        %1544 = vst.msk [vmem:[#allocation4] sm:$0xff] %vm616, %v1542
        %1545 = vst.msk [vmem:[#allocation4 + $0x8] sm:$0xff] %vm616, %v1543
        %v1546 = vld [vmem:[#allocation5] sm:$0xff]
        %v1547 = vld [vmem:[#allocation5 + $0x8] sm:$0xff]
        %v1548 = vadd.f32 %v1148, %v1161
        %v1549 = vadd.f32 %v1548, %v1174
        %v1550 = vadd.f32 %v1549, %v1187
        %v1551 = vadd.f32 %v1550, %v1200
        %v1552 = vadd.f32 %v1551, %v1213
        %v1553 = vadd.f32 %v1552, %v1226
        %v1554 = vadd.f32 %v1553, %v1239
        %v1555 = vadd.f32 %v1154, %v1167
        %v1556 = vadd.f32 %v1555, %v1180
        %v1557 = vadd.f32 %v1556, %v1193
        %v1558 = vadd.f32 %v1557, %v1206
        %v1559 = vadd.f32 %v1558, %v1219
        %v1560 = vadd.f32 %v1559, %v1232
        %v1561 = vadd.f32 %v1560, %v1245
        %v1562 = vadd.f32 %v1546, %v1554
        %v1563 = vadd.f32 %v1547, %v1561
        %1564 = vst.msk [vmem:[#allocation5] sm:$0xff] %vm1524, %v1562
        %1565 = vst.msk [vmem:[#allocation5 + $0x8] sm:$0xff] %vm1524, %v1563
        %p1566 = scmp.eq.s32.totalorder %s38, 1
        // Predicated region
        $region97: #{tpu_custom_call.1} parent=63 // pred_check
          %p1567 = pneg %p1566
        $region98: #{tpu_custom_call.1} parent=63 // pred_check_branch
          %1569 = sbr.rel (%p1567) target = $region100
        $region99: #{tpu_custom_call.1} parent=63 // pred_region
          %v1570 = vld [vmem:[#allocation5] sm:$0xff]
          %v1571 = vld [vmem:[#allocation5 + $0x8] sm:$0xff]
          %v1572 = vmax.f32 %v1570, 1.0
          %v1573 = vmax.f32 %v1571, 1.0
          %v1574 = vrcp.pop %v1572
          %v1575 = vmul.f32 %v1572, %v1574
          %v1576 = vsub.f32 1.0, %v1575
          %v1577 = vmul.f32 %v1574, %v1576
          %v1578 = vadd.f32 %v1574, %v1577
          %vm1579 = vweird.f32 %v1572
          %vm1580 = vweird.f32 %v1574
          %vm1581 = vmor %vm1579, %vm1580
          %v1582 = vsel %vm1581, %v1574, %v1578
          %v1583 = vand.u32 2147483647, %v1572
          %vm1584 = vcmp.eq.f32.partialorder %v1583, 8.507059e+37
          %v1585 = vand.u32 %v1572, 2147483648
          %v1586 = vor.u32 1.1754944e-38, %v1585
          %v1587 = vsel %vm1584, %v1586, %v1582
          %v1588 = vmul.f32 %v1570, %v1587
          %v1589 = vrcp.pop %v1573
          %v1590 = vmul.f32 %v1573, %v1589
          %v1591 = vsub.f32 1.0, %v1590
          %v1592 = vmul.f32 %v1589, %v1591
          %v1593 = vadd.f32 %v1589, %v1592
          %vm1594 = vweird.f32 %v1573
          %vm1595 = vweird.f32 %v1589
          %vm1596 = vmor %vm1594, %vm1595
          %v1597 = vsel %vm1596, %v1589, %v1593
          %v1598 = vand.u32 2147483647, %v1573
          %vm1599 = vcmp.eq.f32.partialorder %v1598, 8.507059e+37
          %v1600 = vand.u32 %v1573, 2147483648
          %v1601 = vor.u32 1.1754944e-38, %v1600
          %v1602 = vsel %vm1599, %v1601, %v1597
          %v1603 = vmul.f32 %v1571, %v1602
          %v1604 = vld [vmem:[#allocation4] sm:$0xff]
          %v1605 = vld [vmem:[#allocation4 + $0x8] sm:$0xff]
          %1607 = vset.pattern.permute.xlu0 0
          %1608 = vperm.xlu0 %1607, %v1572
          %v1609 = vpop.permute.xlu0 %1608
          %1612 = vset.pattern.permute.xlu0 0
          %1613 = vperm.xlu0 %1612, %v1573
          %v1614 = vpop.permute.xlu0 %1613
          %v1616 = vrcp.pop %v1609
          %v1617 = vmul.f32 %v1609, %v1616
          %v1618 = vsub.f32 1.0, %v1617
          %v1619 = vmul.f32 %v1616, %v1618
          %v1620 = vadd.f32 %v1616, %v1619
          %vm1621 = vweird.f32 %v1609
          %vm1622 = vweird.f32 %v1616
          %vm1623 = vmor %vm1621, %vm1622
          %v1624 = vsel %vm1623, %v1616, %v1620
          %v1625 = vand.u32 2147483647, %v1609
          %vm1626 = vcmp.eq.f32.partialorder %v1625, 8.507059e+37
          %v1627 = vand.u32 %v1609, 2147483648
          %v1628 = vor.u32 1.1754944e-38, %v1627
          %v1629 = vsel %vm1626, %v1628, %v1624
          %v1630 = vmul.f32 %v1604, %v1629
          %v1631 = vrcp.pop %v1614
          %v1632 = vmul.f32 %v1614, %v1631
          %v1633 = vsub.f32 1.0, %v1632
          %v1634 = vmul.f32 %v1631, %v1633
          %v1635 = vadd.f32 %v1631, %v1634
          %vm1636 = vweird.f32 %v1614
          %vm1637 = vweird.f32 %v1631
          %vm1638 = vmor %vm1636, %vm1637
          %v1639 = vsel %vm1638, %v1631, %v1635
          %v1640 = vand.u32 2147483647, %v1614
          %vm1641 = vcmp.eq.f32.partialorder %v1640, 8.507059e+37
          %v1642 = vand.u32 %v1614, 2147483648
          %v1643 = vor.u32 1.1754944e-38, %v1642
          %v1644 = vsel %vm1641, %v1643, %v1639
          %v1645 = vmul.f32 %v1605, %v1644
          %v1646 = vld [vmem:[%s502] sm:$0xff]
          %v1647 = vld [vmem:[%s502 + $0x8] sm:$0xff]
          %v1648 = vld [vmem:[#allocation2] sm:$0xff]
          %v1649 = vld [vmem:[#allocation2 + $0x8] sm:$0xff]
          %v1650 = vld [vmem:[#allocation14] sm:$0xff]
          %v1651 = vld [vmem:[#allocation14 + $0x8] sm:$0xff]
          %v1652 = vld [vmem:[#allocation14 + $0x10] sm:$0xff]
          %v1653 = vld [vmem:[#allocation14 + $0x18] sm:$0xff]
          %v1654 = vld [vmem:[#allocation15] sm:$0xff]
          %v1655 = vld [vmem:[#allocation15 + $0x8] sm:$0xff]
          %v1656 = vld [vmem:[#allocation15 + $0x10] sm:$0xff]
          %v1657 = vld [vmem:[#allocation15 + $0x18] sm:$0xff]
          %v1659 = vsel %vm616, %v1630, 0
          %v1662 = vsel %vm616, %v1645, 0
          %1664 = vmatpush.msra.mxu0 0.0
          %1665 = vmatpush.msra.mxu0 0.0
          %1666 = vmatpush.msra.mxu0 0.0
          %1667 = vmatpush.msra.mxu0 0.0
          %1668 = vmatpush.msra.mxu0 0.0
          %1669 = vmatpush.msra.mxu0 0.0
          %1670 = vmatpush.msra.mxu0 0.0
          %1671 = vmatpush.msra.mxu0 0.0
          %1672 = vmatpush.msra.mxu0 0.0
          %1673 = vmatpush.msra.mxu0 0.0
          %1674 = vmatpush.msra.mxu0 0.0
          %1675 = vmatpush.msra.mxu0 0.0
          %1676 = vmatpush.msra.mxu0 %v1657
          %1677 = vmatpush.msra.mxu0 %v1656
          %1678 = vmatpush.msra.mxu0 %v1655
          %1679 = vmatpush.msra.mxu0 %v1654
          %1680 = vmatmul.f32.gmra.mxu0 %v1659
          %v1681 = vpop.f32.mrf.mxu0
          %v1682 = vadd.f32 0.0, %v1681
          %1683 = vmatmul.f32.gmra.mxu0 %v1662
          %v1684 = vpop.f32.mrf.mxu0
          %v1685 = vadd.f32 0.0, %v1684
          %1686 = vdwg.mxu0
          %v1688 = vsel %vm616, %v1648, 0
          %v1691 = vsel %vm616, %v1649, 0
          %1693 = vmatpush.msra.mxu0 0.0
          %1694 = vmatpush.msra.mxu0 0.0
          %1695 = vmatpush.msra.mxu0 0.0
          %1696 = vmatpush.msra.mxu0 0.0
          %1697 = vmatpush.msra.mxu0 0.0
          %1698 = vmatpush.msra.mxu0 0.0
          %1699 = vmatpush.msra.mxu0 0.0
          %1700 = vmatpush.msra.mxu0 0.0
          %1701 = vmatpush.msra.mxu0 0.0
          %1702 = vmatpush.msra.mxu0 0.0
          %1703 = vmatpush.msra.mxu0 0.0
          %1704 = vmatpush.msra.mxu0 0.0
          %1705 = vmatpush.msra.mxu0 %v1653
          %1706 = vmatpush.msra.mxu0 %v1652
          %1707 = vmatpush.msra.mxu0 %v1651
          %1708 = vmatpush.msra.mxu0 %v1650
          %1709 = vmatmul.f32.gmra.mxu0 %v1688
          %v1710 = vpop.f32.mrf.mxu0
          %v1711 = vadd.f32 %v1682, %v1710
          %1712 = vmatmul.f32.gmra.mxu0 %v1691
          %v1713 = vpop.f32.mrf.mxu0
          %v1714 = vadd.f32 %v1685, %v1713
          %1715 = vdwg.mxu0
          %v1716 = vld [vmem:[#allocation17] sm:$0xff]
          %v1717 = vld [vmem:[#allocation17 + $0x8] sm:$0xff]
          %v1718 = vld [vmem:[#allocation17 + $0x10] sm:$0xff]
          %v1719 = vld [vmem:[#allocation17 + $0x18] sm:$0xff]
          %v1720 = vld [vmem:[#allocation17 + $0x20] sm:$0xff]
          %v1721 = vld [vmem:[#allocation17 + $0x28] sm:$0xff]
          %v1722 = vld [vmem:[#allocation17 + $0x30] sm:$0xff]
          %v1723 = vld [vmem:[#allocation17 + $0x38] sm:$0xff]
          %vm1724 = vcmask 523264
          %v1726 = vsel %vm1724, %v1646, 0
          %v1729 = vsel %vm1724, %v1647, 0
          %1731 = vmatpush.msra.mxu0 0.0
          %1732 = vmatpush.msra.mxu0 0.0
          %1733 = vmatpush.msra.mxu0 0.0
          %1734 = vmatpush.msra.mxu0 0.0
          %1735 = vmatpush.msra.mxu0 0.0
          %1736 = vmatpush.msra.mxu0 0.0
          %1737 = vmatpush.msra.mxu0 0.0
          %1738 = vmatpush.msra.mxu0 0.0
          %1739 = vmatpush.msra.mxu0 %v1723
          %1740 = vmatpush.msra.mxu0 %v1722
          %1741 = vmatpush.msra.mxu0 %v1721
          %1742 = vmatpush.msra.mxu0 %v1720
          %1743 = vmatpush.msra.mxu0 %v1719
          %1744 = vmatpush.msra.mxu0 %v1718
          %1745 = vmatpush.msra.mxu0 %v1717
          %1746 = vmatpush.msra.mxu0 %v1716
          %1747 = vmatmul.f32.gmra.mxu0 %v1726
          %v1748 = vpop.f32.mrf.mxu0
          %v1749 = vadd.f32 0.0, %v1748
          %1750 = vmatmul.f32.gmra.mxu0 %v1729
          %v1751 = vpop.f32.mrf.mxu0
          %v1752 = vadd.f32 0.0, %v1751
          %1753 = vdwg.mxu0
          %v1754 = vadd.f32 %v1711, %v1749
          %v1755 = vadd.f32 %v1714, %v1752
          %v1756 = vld [vmem:[#allocation3] sm:$0xff]
          %v1757 = vld [vmem:[#allocation3 + $0x8] sm:$0xff]
          %v1758 = vld [vmem:[%s8] sm:$0x1]
          %1760 = vset.pattern.permute.xlu0 0
          %1761 = vperm.xlu0 %1760, %v1756
          %v1762 = vpop.permute.xlu0 %1761
          %1765 = vset.pattern.permute.xlu0 0
          %1766 = vperm.xlu0 %1765, %v1757
          %v1767 = vpop.permute.xlu0 %1766
          %v1770 = vperm.slane %v1758, 0
          %v1772 = vmul.f32 %v1762, %v1770
          %v1773 = vmul.f32 %v1767, %v1770
          %v1774 = vld [vmem:[%s9] sm:$0x1]
          %1776 = vset.pattern.permute.xlu0 0
          %1777 = vperm.xlu0 %1776, %v1588
          %v1778 = vpop.permute.xlu0 %1777
          %1781 = vset.pattern.permute.xlu0 0
          %1782 = vperm.xlu0 %1781, %v1603
          %v1783 = vpop.permute.xlu0 %1782
          %v1786 = vperm.slane %v1774, 0
          %v1788 = vmul.f32 %v1778, %v1786
          %v1789 = vmul.f32 %v1783, %v1786
          %v1790 = vadd.f32 %v1772, %v1788
          %v1791 = vadd.f32 %v1773, %v1789
          %v1792 = vld [vmem:[%s10] sm:$0x1]
          %v1794 = vperm.slane %v1792, 0
          %v1796 = vadd.f32 %v1790, %v1794
          %v1797 = vadd.f32 %v1791, %v1794
          %v1798 = vadd.f32 %v1754, %v1796
          %v1799 = vadd.f32 %v1755, %v1797
          %1800 = vst [vmem:[%s571] sm:$0xff] %v1798
          %1801 = vst [vmem:[%s571 + $0x8] sm:$0xff] %v1799
        $region100: #{tpu_custom_call.1} parent=63 // pred_fallthru
          _
        %s1802 = sand.u32 %s303, 1
        %s1803 = scalar_lea.sflag [#allocation8], %s1802
        %s1804 = sand.u32 %s303, 1
        %s1805 = smul.addr %s1804, 16
        %s1806 = scalar_lea.vmem [#allocation18], %s1805
        // Predicated region
        $region101: #{tpu_custom_call.1} parent=63 // pred_check
          %p1807 = pneg %p313
        $region102: #{tpu_custom_call.1} parent=63 // pred_check_branch
          %1809 = sbr.rel (%p1807) target = $region104
        $region103: #{tpu_custom_call.1} parent=63 // pred_region
          %1811 = vsyncadd %s1803, 0
          %s1812 = smul.addr %s37, 2
          %s1813 = smul.addr %s1812, 8
          %s1814 = scalar_lea.hbm %s11, %s1813
          %s1815 = sshll.u32 %s1806, 4
          %s1816 = int_to_ptr.vmem [resolvable:$true] %s1815
          %s1817 = sshll.u32 %s1814, 4
          %s1818 = int_to_ptr.hbm [resolvable:$true] %s1817
          %1823 = dma.vmem_to_hbm [thread:$0]  %s1816, 256, %s1818, %s1803, 128, 128, 8
        $region104: #{tpu_custom_call.1} parent=63 // pred_fallthru
          _
      $region64: #{tpu_custom_call.1} parent=5 // pred_fallthru
        _
      %p1824 = scmp.le.s32.totalorder 2, %s28
      // Predicated region
      $region105: #{tpu_custom_call.1} parent=5 // pred_check
        %p1825 = pneg %p1824
      $region106: #{tpu_custom_call.1} parent=5 // pred_check_branch
        %1827 = sbr.rel (%p1825) target = $region108
      $region107: #{tpu_custom_call.1} parent=5 // pred_region
        %s1828 = ssub.s32 %s28, 2
        // Predicated region
        $region109: #{tpu_custom_call.1} parent=107 // pred_check
          %p1829 = pneg %p319
        $region110: #{tpu_custom_call.1} parent=107 // pred_check_branch
          %1831 = sbr.rel (%p1829) target = $region112
        $region111: #{tpu_custom_call.1} parent=107 // pred_region
          %s1832 = sand.u32 %s304, 1
          %s1833 = scalar_lea.sflag [#allocation8], %s1832
          %s1834 = sand.u32 %s304, 1
          %s1835 = smul.addr %s1834, 16
          %s1836 = scalar_lea.vmem [#allocation18], %s1835
          %1838 = dma.done %s1833, 256
        $region112: #{tpu_custom_call.1} parent=107 // pred_fallthru
          _
      $region108: #{tpu_custom_call.1} parent=5 // pred_fallthru
        _
    $region6: #{tpu_custom_call.1} parent=1 // loop_footer
      %s32 = sadd.s32 1, %s28
    $region7: #{tpu_custom_call.1} parent=1 // loop_footer_branch
      %27 = sbr.rel target = $region3
    $region8: #{tpu_custom_call.1} parent=1 // loop_exit
      _
    %1839 = vsyncpa [#allocation7], 1
    %s1840 = scalar_lea.sflag [#allocation7], 1
    %1841 = vsyncpa %s1840, 1
    %1842 = vsyncpa [#allocation10], 1
    %s1843 = scalar_lea.sflag [#allocation10], 1
    %1844 = vsyncpa %s1843, 1
    %1845 = vsyncpa [#allocation13], 1
    %1846 = vsyncpa [#allocation16], 1
    %1847 = vsyncpa [#allocation8], 1
    %s1848 = scalar_lea.sflag [#allocation8], 1
    %1849 = vsyncpa %s1848, 1

</llo_original>
